<compile_context>
chip_gen: v7x
topology: tpu7x:2x2x1
jax: 0.10.0
libtpu: 0.0.40
codegen_flags: <defaults>
</compile_context>

<pallas_src>
import functools

import jax
import jax.numpy as jnp
import numpy as np
from jax.experimental import pallas as pl
from jax.experimental.pallas import tpu as pltpu


# ----------------------------------------------------------------------------
# Model config (mirrors the PyTorch CNN spec)
# ----------------------------------------------------------------------------
LAYER_CONFIG = [
    {"out_channels": 8, "kernel_size": 3, "stride": 1, "padding": 1,
     "activation": "relu", "pool": {"kernel_size": 2, "stride": 2}},
    {"out_channels": 16, "kernel_size": 3, "stride": 1, "padding": 1,
     "activation": "leaky_relu"},
]
NUM_CLASSES = 10
IN_CHANNELS = 4
IMG_H = IMG_W = 16
LEAKY_SLOPE = 0.1          # reference module uses nn.LeakyReLU(0.1)


# ----------------------------------------------------------------------------
# Parameter init (PyTorch layouts: conv (Cout, Cin, K, K), fc (ncls, C*4*4))
# ----------------------------------------------------------------------------
def init_params(key, in_channels, num_classes, layer_config):
    conv_params = []
    c = in_channels
    for cfg in layer_config:
        key, k1, k2 = jax.random.split(key, 3)
        ks = cfg["kernel_size"]
        w = 0.1 * jax.random.normal(k1, (cfg["out_channels"], c, ks, ks), jnp.float32)
        b = 0.1 * jax.random.normal(k2, (cfg["out_channels"],), jnp.float32)
        conv_params.append((w, b))
        c = cfg["out_channels"]
    key, k1, k2 = jax.random.split(key, 3)
    fc_w = 0.1 * jax.random.normal(k1, (num_classes, c * 4 * 4), jnp.float32)
    fc_b = 0.1 * jax.random.normal(k2, (num_classes,), jnp.float32)
    return conv_params, (fc_w, fc_b)


# ----------------------------------------------------------------------------
# One-time parameter packing (all layout work hoisted out of the forward pass)
# ----------------------------------------------------------------------------
def _conv_band_matrix(w, width, pad):
    """w: (Cout, Cin, K, K) torch layout.  Returns the fused (K*W*Cin, Wo*Cout)
    banded matrix folding the kh/kw/cin contraction AND width zero-padding:
      B[kh*W*Cin + win*Cin + cin, wo*Cout + cout] = w[cout, cin, kh, win-wo+pad]
    (0 outside the band)."""
    cout, cin, k, _ = w.shape
    wo = width + 2 * pad - k + 1
    sel = np.zeros((k, width, wo), np.float32)
    for kw in range(k):
        for o in range(wo):
            p = o + kw - pad
            if 0 <= p < width:
                sel[kw, p, o] = 1.0
    rhs = np.einsum("kpw,ocak->apcwo", sel, np.asarray(w, np.float32))
    return rhs.reshape(k * width * cin, wo * cout)


def pack_params(conv_params, fc_params, layer_config, in_channels, img_h, img_w,
                images_per_step, adaptive_hw=(4, 4)):
    B = images_per_step
    tensors, layers = [], []
    C, H, W = in_channels, img_h, img_w
    for cfg, (w, b) in zip(layer_config, conv_params):
        k, s, p = cfg["kernel_size"], cfg["stride"], cfg["padding"]
        assert s == 1, "fused kernel assumes stride-1 convs (matches given config)"
        cout = int(w.shape[0])
        Ho, Wo = H + 2 * p - k + 1, W + 2 * p - k + 1
        layer = dict(k=k, pad=p, H=H, W=W, Cin=C, Ho=Ho, Wo=Wo, Cout=cout,
                     act=cfg["activation"], rhs_idx=len(tensors),
                     b_idx=len(tensors) + 1, pool=None)
        tensors.append(jnp.asarray(
            _conv_band_matrix(np.asarray(w, np.float32), W, p), jnp.bfloat16))
        tensors.append(jnp.asarray(
            np.tile(np.asarray(b, np.float32), Wo).reshape(1, Wo * cout)))
        H, W, C = Ho, Wo, cout
        if "pool" in cfg:
            q = cfg["pool"]["kernel_size"]
            assert cfg["pool"]["stride"] == q and H % q == 0 and W % q == 0, \
                "fused kernel assumes pool kernel == stride, dividing H and W"
            Hp, Wp = H // q, W // q
            # Row-max selector: ONE left matmul producing all q candidates
            # stacked along sublanes (exact one-hot selection, kept f32).
            S = np.zeros((q * B * Hp, B * H), np.float32)
            for d in range(q):
                for bb in range(B):
                    for g in range(Hp):
                        S[d * B * Hp + bb * Hp + g, bb * H + g * q + d] = 1.0
            # Lane-max selector: ONE right matmul producing all q candidates
            # side by side along lanes.
            T = np.zeros((W * C, q * Wp * C), np.float32)
            for d in range(q):
                for g in range(Wp):
                    for c in range(C):
                        T[(g * q + d) * C + c, d * Wp * C + g * C + c] = 1.0
            layer["pool"] = dict(q=q, Hp=Hp, Wp=Wp,
                                 S_idx=len(tensors), T_idx=len(tensors) + 1)
            tensors += [jnp.asarray(S), jnp.asarray(T)]
            H, W = Hp, Wp
        layers.append(layer)

    # Tail: adaptive_avg_pool(4,4) + PyTorch (c,h,w) flatten + fc folded into
    # ONE (Hf*Wf*Cf, ncls) weight (plus the fc bias).
    out_h, out_w = adaptive_hw
    Ph = np.zeros((out_h, H), np.float32)
    for g in range(out_h):
        s0, e0 = (g * H) // out_h, -(-((g + 1) * H) // out_h)
        Ph[g, s0:e0] = 1.0 / (e0 - s0)
    Aw = np.zeros((W, out_w), np.float32)
    for g in range(out_w):
        s0, e0 = (g * W) // out_w, -(-((g + 1) * W) // out_w)
        Aw[s0:e0, g] = 1.0 / (e0 - s0)
    fc_w, fc_b = fc_params
    ncls = int(fc_w.shape[0])
    fc_r = np.asarray(fc_w, np.float32).reshape(ncls, C, out_h, out_w)
    wtail = np.einsum("ah,wb,ncab->hwcn", Ph, Aw, fc_r).reshape(H * W * C, ncls)

    meta = dict(layers=layers, num_classes=ncls, in_channels=in_channels,
                img_h=img_h, img_w=img_w, images_per_step=B, feat=(H, W, C),
                wt_idx=len(tensors), bt_idx=len(tensors) + 1)
    tensors += [jnp.asarray(wtail, jnp.bfloat16),
                jnp.asarray(np.asarray(fc_b, np.float32).reshape(1, ncls))]
    return meta, tensors


# ----------------------------------------------------------------------------
# The fused kernel: one grid step == full forward pass for B stacked images.
# ----------------------------------------------------------------------------
def _make_kernel(meta, num_weight_tensors):
    layers = meta["layers"]
    B = meta["images_per_step"]
    Hf, Wf, Cf = meta["feat"]

    def kernel(*refs):
        x_ref = refs[0]
        w = refs[1:1 + num_weight_tensors]
        out_ref = refs[1 + num_weight_tensors]
        scratch = refs[2 + num_weight_tensors:]
        xq_scr = scratch[:len(layers)]
        flat_scr = scratch[len(layers)]

        a = x_ref[0]                                  # (B*H, W*Cin) row layout
        for li, L in enumerate(layers):
            k, p, H, Ho = L["k"], L["pad"], L["H"], L["Ho"]
            WC = L["W"] * L["Cin"]
            xq = xq_scr[li]                           # (B*Ho, k*WC) im2row scratch
            # --- im2row in VMEM: k shifted lane-blocks per image; only the pad
            #     boundary rows are zeroed, and they are zeroed every step so the
            #     kernel stays correct under megacore "parallel" partitioning.
            for b in range(B):
                for kh in range(k):
                    lo, hi = max(0, p - kh), min(Ho, H + p - kh)
                    xq[pl.ds(b * Ho + lo, hi - lo), pl.ds(kh * WC, WC)] = \
                        a[b * H + lo + kh - p: b * H + hi + kh - p, :]
                    if lo > 0:
                        xq[pl.ds(b * Ho, lo), pl.ds(kh * WC, WC)] = \
                            jnp.zeros((lo, WC), jnp.float32)
                    if hi < Ho:
                        xq[pl.ds(b * Ho + hi, Ho - hi), pl.ds(kh * WC, WC)] = \
                            jnp.zeros((Ho - hi, WC), jnp.float32)
            # --- one fused conv GEMM (K = k*W*Cin), bf16 inputs / f32 accumulate
            acc = jnp.dot(xq[...].astype(jnp.bfloat16), w[L["rhs_idx"]][...],
                          preferred_element_type=jnp.float32) + w[L["b_idx"]][...]
            if L["act"] == "relu":
                a = jnp.maximum(acc, 0.0)
            elif L["act"] == "leaky_relu":
                a = jnp.where(acc > 0, acc, LEAKY_SLOPE * acc)
            else:
                a = acc
            # --- max pool: 2 MXU selection ops total + VPU maxes (exact, f32)
            if L["pool"] is not None:
                P = L["pool"]
                q, Hp, WpC = P["q"], P["Hp"], P["Wp"] * L["Cout"]
                hm = jnp.dot(w[P["S_idx"]][...], a,
                             preferred_element_type=jnp.float32)
                hmax = hm[0:B * Hp, :]
                for d in range(1, q):
                    hmax = jnp.maximum(hmax, hm[d * B * Hp:(d + 1) * B * Hp, :])
                t = jnp.dot(hmax, w[P["T_idx"]][...],
                            preferred_element_type=jnp.float32)
                a = t[:, 0:WpC]
                for d in range(1, q):
                    a = jnp.maximum(a, t[:, d * WpC:(d + 1) * WpC])

        # --- tail: lay each image's rows out flat along lanes (tiny stores),
        #     then ONE GEMM against the pre-folded (avg_pool+flatten+fc) weight.
        LC = Wf * Cf
        for b in range(B):
            for h in range(Hf):
                flat_scr[pl.ds(b, 1), pl.ds(h * LC, LC)] = \
                    a[b * Hf + h: b * Hf + h + 1, :]
        logits = jnp.dot(flat_scr[...].astype(jnp.bfloat16),
                         w[meta["wt_idx"]][...],
                         preferred_element_type=jnp.float32) + w[meta["bt_idx"]][...]
        out_ref[0] = logits

    return kernel


def _const_index_map(ndim, i):
    return (0,) * ndim


def build_forward(meta, tensors, batch):
    B = meta["images_per_step"]
    assert batch % B == 0, "batch must be divisible by images_per_step"
    num_steps = batch // B
    H0, W0, C0 = meta["img_h"], meta["img_w"], meta["in_channels"]
    Hf, Wf, Cf = meta["feat"]
    ncls = meta["num_classes"]
    kernel = _make_kernel(meta, len(tensors))

    in_specs = [pl.BlockSpec((1, B * H0, W0 * C0), lambda i: (i, 0, 0))]
    for t in tensors:
        in_specs.append(pl.BlockSpec(tuple(t.shape),
                                     functools.partial(_const_index_map, t.ndim)))
    out_specs = pl.BlockSpec((1, B, ncls), lambda i: (i, 0, 0))
    scratch_shapes = [
        pltpu.VMEM((B * L["Ho"], L["k"] * L["W"] * L["Cin"]), jnp.float32)
        for L in meta["layers"]
    ] + [pltpu.VMEM((B, Hf * Wf * Cf), jnp.float32)]

    fused = pl.pallas_call(
        kernel,
        out_shape=jax.ShapeDtypeStruct((num_steps, B, ncls), jnp.float32),
        grid=(num_steps,),
        in_specs=in_specs,
        out_specs=out_specs,
        scratch_shapes=scratch_shapes,
        compiler_params=pltpu.CompilerParams(
            dimension_semantics=("parallel",),   # shards steps over v7x's 2 TCs
            vmem_limit_bytes=32 * 1024 * 1024,
        ),
    )

    def forward(x_nchw):
        n, c, h, w_ = x_nchw.shape
        assert (n, c, h, w_) == (batch, C0, H0, W0)
        # NCHW -> batch-stacked row layout (num_steps, B*H, W*C).
        x_rows = jnp.transpose(x_nchw, (0, 2, 3, 1)).reshape(num_steps, B * h, w_ * c)
        return fused(x_rows, *tensors).reshape(batch, ncls)

    return jax.jit(forward)


def _default_images_per_step(batch):
    # Keep two "parallel" grid steps when possible so both v7x TensorCores get
    # work (per perf review: do not collapse to grid=(1,)); the remaining batch
    # is packed into the GEMM M dimension.  On single-TC chips (v5e/v6e) you
    # can pass images_per_step=batch to fold the whole batch into one step.
    return max(1, batch // 2)


if __name__ == "__main__":
    key = jax.random.PRNGKey(0)
    key, kx = jax.random.split(key)
    batch = 2
    x = jax.random.normal(kx, (batch, IN_CHANNELS, IMG_H, IMG_W), jnp.float32)
    conv_params, fc_params = init_params(key, IN_CHANNELS, NUM_CLASSES, LAYER_CONFIG)

    images_per_step = _default_images_per_step(batch)
    meta, tensors = pack_params(conv_params, fc_params, LAYER_CONFIG,
                                IN_CHANNELS, IMG_H, IMG_W, images_per_step)
    forward = build_forward(meta, tensors, batch)

    out = jax.block_until_ready(forward(x))
    assert out.shape == (batch, NUM_CLASSES), out.shape
    assert out.dtype == jnp.float32
    print("KERNEL_OK")
</pallas_src>

<mosaic_0001>
module attributes {stable_mosaic.version = 11 : i64} {
  func.func @kernel(%arg0: i32, %arg1: memref<1x16x64xf32, #tpu.memory_space<vmem>>, %arg2: memref<192x128xbf16, #tpu.memory_space<vmem>>, %arg3: memref<1x128xf32, #tpu.memory_space<vmem>>, %arg4: memref<16x16xf32, #tpu.memory_space<vmem>>, %arg5: memref<128x128xf32, #tpu.memory_space<vmem>>, %arg6: memref<192x128xbf16, #tpu.memory_space<vmem>>, %arg7: memref<1x128xf32, #tpu.memory_space<vmem>>, %arg8: memref<1024x10xbf16, #tpu.memory_space<vmem>>, %arg9: memref<1x10xf32, #tpu.memory_space<vmem>>, %arg10: memref<1x1x10xf32, #tpu.memory_space<vmem>>, %arg11: memref<16x192xf32, #tpu.memory_space<vmem>>, %arg12: memref<8x192xf32, #tpu.memory_space<vmem>>, %arg13: memref<1x1024xf32, #tpu.memory_space<vmem>>) attributes {dimension_semantics = [#tpu.dimension_semantics<parallel>], iteration_bounds = array<i64: 2>, scalar_prefetch = 0 : i64, scratch_operands = 3 : i64, tpu.core_type = #tpu.core_type<tc>, window_params = [{transform_indices = @transform_0, window_bounds = array<i64: 1, 16, 64>}, {pipeline_mode = #tpu.pipeline_mode<synchronous>, transform_indices = @transform_1, window_bounds = array<i64: 192, 128>}, {pipeline_mode = #tpu.pipeline_mode<synchronous>, transform_indices = @transform_2, window_bounds = array<i64: 1, 128>}, {pipeline_mode = #tpu.pipeline_mode<synchronous>, transform_indices = @transform_3, window_bounds = array<i64: 16, 16>}, {pipeline_mode = #tpu.pipeline_mode<synchronous>, transform_indices = @transform_4, window_bounds = array<i64: 128, 128>}, {pipeline_mode = #tpu.pipeline_mode<synchronous>, transform_indices = @transform_5, window_bounds = array<i64: 192, 128>}, {pipeline_mode = #tpu.pipeline_mode<synchronous>, transform_indices = @transform_6, window_bounds = array<i64: 1, 128>}, {pipeline_mode = #tpu.pipeline_mode<synchronous>, transform_indices = @transform_7, window_bounds = array<i64: 1024, 10>}, {pipeline_mode = #tpu.pipeline_mode<synchronous>, transform_indices = @transform_8, window_bounds = array<i64: 1, 10>}, {transform_indices = @transform_9, window_bounds = array<i64: 1, 1, 10>}]} {
    %c0 = arith.constant 0 : index
    %c0_0 = arith.constant 0 : index
    %c0_1 = arith.constant 0 : index
    %0 = vector.load %arg1[%c0, %c0_0, %c0_1] : memref<1x16x64xf32, #tpu.memory_space<vmem>>, vector<1x16x64xf32>
    %1 = vector.shape_cast %0 : vector<1x16x64xf32> to vector<16x64xf32>
    %2 = vector.extract_strided_slice %1 {offsets = [0, 0], sizes = [15, 64], strides = [1, 1]} : vector<16x64xf32> to vector<15x64xf32>
    %c1 = arith.constant 1 : index
    %c0_2 = arith.constant 0 : index
    %3 = vector.load %arg11[%c1, %c0_2] : memref<16x192xf32, #tpu.memory_space<vmem>>, vector<15x64xf32>
    tpu.vector_store %arg11[%c1, %c0_2], %2 {strides = array<i32>} : memref<16x192xf32, #tpu.memory_space<vmem>>, vector<15x64xf32>,
    %cst = arith.constant 0.000000e+00 : f32
    %4 = vector.broadcast %cst : f32 to vector<1x64xf32>
    %c0_3 = arith.constant 0 : index
    %c0_4 = arith.constant 0 : index
    %5 = vector.load %arg11[%c0_3, %c0_4] : memref<16x192xf32, #tpu.memory_space<vmem>>, vector<1x64xf32>
    tpu.vector_store %arg11[%c0_3, %c0_4], %4 {strides = array<i32>} : memref<16x192xf32, #tpu.memory_space<vmem>>, vector<1x64xf32>,
    %c0_5 = arith.constant 0 : index
    %c64 = arith.constant 64 : index
    %6 = vector.load %arg11[%c0_5, %c64] : memref<16x192xf32, #tpu.memory_space<vmem>>, vector<16x64xf32>
    tpu.vector_store %arg11[%c0_5, %c64], %1 {strides = array<i32>} : memref<16x192xf32, #tpu.memory_space<vmem>>, vector<16x64xf32>,
    %7 = vector.extract_strided_slice %1 {offsets = [1, 0], sizes = [15, 64], strides = [1, 1]} : vector<16x64xf32> to vector<15x64xf32>
    %c0_6 = arith.constant 0 : index
    %c128 = arith.constant 128 : index
    %8 = vector.load %arg11[%c0_6, %c128] : memref<16x192xf32, #tpu.memory_space<vmem>>, vector<15x64xf32>
    tpu.vector_store %arg11[%c0_6, %c128], %7 {strides = array<i32>} : memref<16x192xf32, #tpu.memory_space<vmem>>, vector<15x64xf32>,
    %cst_7 = arith.constant 0.000000e+00 : f32
    %9 = vector.broadcast %cst_7 : f32 to vector<1x64xf32>
    %c15 = arith.constant 15 : index
    %c128_8 = arith.constant 128 : index
    %10 = vector.load %arg11[%c15, %c128_8] : memref<16x192xf32, #tpu.memory_space<vmem>>, vector<1x64xf32>
    tpu.vector_store %arg11[%c15, %c128_8], %9 {strides = array<i32>} : memref<16x192xf32, #tpu.memory_space<vmem>>, vector<1x64xf32>,
    %c0_9 = arith.constant 0 : index
    %c0_10 = arith.constant 0 : index
    %11 = vector.load %arg11[%c0_9, %c0_10] : memref<16x192xf32, #tpu.memory_space<vmem>>, vector<16x192xf32>
    %12 = arith.truncf %11 : vector<16x192xf32> to vector<16x192xbf16>
    %c0_11 = arith.constant 0 : index
    %c0_12 = arith.constant 0 : index
    %13 = vector.load %arg2[%c0_11, %c0_12] : memref<192x128xbf16, #tpu.memory_space<vmem>>, vector<192x128xbf16>
    %cst_13 = arith.constant dense<0.000000e+00> : vector<16x128xf32>
    %14 = tpu.matmul %12, %13, %cst_13 {dimension_numbers = #tpu.dot_dimension_numbers<[1], [0], [0], [1], [0, 0, 1, 1], [], []>} : vector<16x192xbf16>, vector<192x128xbf16>, vector<16x128xf32> -> vector<16x128xf32>
    %c0_14 = arith.constant 0 : index
    %c0_15 = arith.constant 0 : index
    %15 = vector.load %arg3[%c0_14, %c0_15] : memref<1x128xf32, #tpu.memory_space<vmem>>, vector<1x128xf32>
    %16 = vector.broadcast %15 : vector<1x128xf32> to vector<16x128xf32>
    %17 = arith.addf %14, %16 : vector<16x128xf32>
    %cst_16 = arith.constant 0.000000e+00 : f32
    %18 = vector.broadcast %cst_16 : f32 to vector<16x128xf32>
    %19 = arith.maximumf %17, %18 : vector<16x128xf32>
    %c0_17 = arith.constant 0 : index
    %c0_18 = arith.constant 0 : index
    %20 = vector.load %arg4[%c0_17, %c0_18] : memref<16x16xf32, #tpu.memory_space<vmem>>, vector<16x16xf32>
    %cst_19 = arith.constant dense<0.000000e+00> : vector<16x128xf32>
    %21 = tpu.matmul %20, %19, %cst_19 {dimension_numbers = #tpu.dot_dimension_numbers<[1], [0], [0], [1], [0, 0, 1, 1], [], []>} : vector<16x16xf32>, vector<16x128xf32>, vector<16x128xf32> -> vector<16x128xf32>
    %22 = vector.extract_strided_slice %21 {offsets = [0, 0], sizes = [8, 128], strides = [1, 1]} : vector<16x128xf32> to vector<8x128xf32>
    %23 = vector.extract_strided_slice %21 {offsets = [8, 0], sizes = [8, 128], strides = [1, 1]} : vector<16x128xf32> to vector<8x128xf32>
    %24 = arith.maximumf %22, %23 : vector<8x128xf32>
    %c0_20 = arith.constant 0 : index
    %c0_21 = arith.constant 0 : index
    %25 = vector.load %arg5[%c0_20, %c0_21] : memref<128x128xf32, #tpu.memory_space<vmem>>, vector<128x128xf32>
    %cst_22 = arith.constant dense<0.000000e+00> : vector<8x128xf32>
    %26 = tpu.matmul %24, %25, %cst_22 {dimension_numbers = #tpu.dot_dimension_numbers<[1], [0], [0], [1], [0, 0, 1, 1], [], []>} : vector<8x128xf32>, vector<128x128xf32>, vector<8x128xf32> -> vector<8x128xf32>
    %27 = vector.extract_strided_slice %26 {offsets = [0, 0], sizes = [8, 64], strides = [1, 1]} : vector<8x128xf32> to vector<8x64xf32>
    %28 = vector.extract_strided_slice %26 {offsets = [0, 64], sizes = [8, 64], strides = [1, 1]} : vector<8x128xf32> to vector<8x64xf32>
    %29 = arith.maximumf %27, %28 : vector<8x64xf32>
    %30 = vector.extract_strided_slice %29 {offsets = [0, 0], sizes = [7, 64], strides = [1, 1]} : vector<8x64xf32> to vector<7x64xf32>
    %c1_23 = arith.constant 1 : index
    %c0_24 = arith.constant 0 : index
    %31 = vector.load %arg12[%c1_23, %c0_24] : memref<8x192xf32, #tpu.memory_space<vmem>>, vector<7x64xf32>
    tpu.vector_store %arg12[%c1_23, %c0_24], %30 {strides = array<i32>} : memref<8x192xf32, #tpu.memory_space<vmem>>, vector<7x64xf32>,
    %cst_25 = arith.constant 0.000000e+00 : f32
    %32 = vector.broadcast %cst_25 : f32 to vector<1x64xf32>
    %c0_26 = arith.constant 0 : index
    %c0_27 = arith.constant 0 : index
    %33 = vector.load %arg12[%c0_26, %c0_27] : memref<8x192xf32, #tpu.memory_space<vmem>>, vector<1x64xf32>
    tpu.vector_store %arg12[%c0_26, %c0_27], %32 {strides = array<i32>} : memref<8x192xf32, #tpu.memory_space<vmem>>, vector<1x64xf32>,
    %c0_28 = arith.constant 0 : index
    %c64_29 = arith.constant 64 : index
    %34 = vector.load %arg12[%c0_28, %c64_29] : memref<8x192xf32, #tpu.memory_space<vmem>>, vector<8x64xf32>
    tpu.vector_store %arg12[%c0_28, %c64_29], %29 {strides = array<i32>} : memref<8x192xf32, #tpu.memory_space<vmem>>, vector<8x64xf32>,
    %35 = vector.extract_strided_slice %29 {offsets = [1, 0], sizes = [7, 64], strides = [1, 1]} : vector<8x64xf32> to vector<7x64xf32>
    %c0_30 = arith.constant 0 : index
    %c128_31 = arith.constant 128 : index
    %36 = vector.load %arg12[%c0_30, %c128_31] : memref<8x192xf32, #tpu.memory_space<vmem>>, vector<7x64xf32>
    tpu.vector_store %arg12[%c0_30, %c128_31], %35 {strides = array<i32>} : memref<8x192xf32, #tpu.memory_space<vmem>>, vector<7x64xf32>,
    %cst_32 = arith.constant 0.000000e+00 : f32
    %37 = vector.broadcast %cst_32 : f32 to vector<1x64xf32>
    %c7 = arith.constant 7 : index
    %c128_33 = arith.constant 128 : index
    %38 = vector.load %arg12[%c7, %c128_33] : memref<8x192xf32, #tpu.memory_space<vmem>>, vector<1x64xf32>
    tpu.vector_store %arg12[%c7, %c128_33], %37 {strides = array<i32>} : memref<8x192xf32, #tpu.memory_space<vmem>>, vector<1x64xf32>,
    %c0_34 = arith.constant 0 : index
    %c0_35 = arith.constant 0 : index
    %39 = vector.load %arg12[%c0_34, %c0_35] : memref<8x192xf32, #tpu.memory_space<vmem>>, vector<8x192xf32>
    %40 = arith.truncf %39 : vector<8x192xf32> to vector<8x192xbf16>
    %c0_36 = arith.constant 0 : index
    %c0_37 = arith.constant 0 : index
    %41 = vector.load %arg6[%c0_36, %c0_37] : memref<192x128xbf16, #tpu.memory_space<vmem>>, vector<192x128xbf16>
    %cst_38 = arith.constant dense<0.000000e+00> : vector<8x128xf32>
    %42 = tpu.matmul %40, %41, %cst_38 {dimension_numbers = #tpu.dot_dimension_numbers<[1], [0], [0], [1], [0, 0, 1, 1], [], []>} : vector<8x192xbf16>, vector<192x128xbf16>, vector<8x128xf32> -> vector<8x128xf32>
    %c0_39 = arith.constant 0 : index
    %c0_40 = arith.constant 0 : index
    %43 = vector.load %arg7[%c0_39, %c0_40] : memref<1x128xf32, #tpu.memory_space<vmem>>, vector<1x128xf32>
    %44 = vector.broadcast %43 : vector<1x128xf32> to vector<8x128xf32>
    %45 = arith.addf %42, %44 : vector<8x128xf32>
    %cst_41 = arith.constant 0.000000e+00 : f32
    %46 = vector.broadcast %cst_41 : f32 to vector<8x128xf32>
    %47 = arith.cmpf ogt, %45, %46 : vector<8x128xf32>
    %cst_42 = arith.constant 1.000000e-01 : f32
    %48 = vector.broadcast %cst_42 : f32 to vector<8x128xf32>
    %49 = arith.mulf %48, %45 : vector<8x128xf32>
    %50 = arith.select %47, %45, %49 : vector<8x128xi1>, vector<8x128xf32>
    %51 = vector.extract_strided_slice %50 {offsets = [0, 0], sizes = [1, 128], strides = [1, 1]} : vector<8x128xf32> to vector<1x128xf32>
    %c0_43 = arith.constant 0 : index
    %c0_44 = arith.constant 0 : index
    %52 = vector.load %arg13[%c0_43, %c0_44] : memref<1x1024xf32, #tpu.memory_space<vmem>>, vector<1x128xf32>
    tpu.vector_store %arg13[%c0_43, %c0_44], %51 {strides = array<i32>} : memref<1x1024xf32, #tpu.memory_space<vmem>>, vector<1x128xf32>,
    %53 = vector.extract_strided_slice %50 {offsets = [1, 0], sizes = [1, 128], strides = [1, 1]} : vector<8x128xf32> to vector<1x128xf32>
    %c0_45 = arith.constant 0 : index
    %c128_46 = arith.constant 128 : index
    %54 = vector.load %arg13[%c0_45, %c128_46] : memref<1x1024xf32, #tpu.memory_space<vmem>>, vector<1x128xf32>
    tpu.vector_store %arg13[%c0_45, %c128_46], %53 {strides = array<i32>} : memref<1x1024xf32, #tpu.memory_space<vmem>>, vector<1x128xf32>,
    %55 = vector.extract_strided_slice %50 {offsets = [2, 0], sizes = [1, 128], strides = [1, 1]} : vector<8x128xf32> to vector<1x128xf32>
    %c0_47 = arith.constant 0 : index
    %c256 = arith.constant 256 : index
    %56 = vector.load %arg13[%c0_47, %c256] : memref<1x1024xf32, #tpu.memory_space<vmem>>, vector<1x128xf32>
    tpu.vector_store %arg13[%c0_47, %c256], %55 {strides = array<i32>} : memref<1x1024xf32, #tpu.memory_space<vmem>>, vector<1x128xf32>,
    %57 = vector.extract_strided_slice %50 {offsets = [3, 0], sizes = [1, 128], strides = [1, 1]} : vector<8x128xf32> to vector<1x128xf32>
    %c0_48 = arith.constant 0 : index
    %c384 = arith.constant 384 : index
    %58 = vector.load %arg13[%c0_48, %c384] : memref<1x1024xf32, #tpu.memory_space<vmem>>, vector<1x128xf32>
    tpu.vector_store %arg13[%c0_48, %c384], %57 {strides = array<i32>} : memref<1x1024xf32, #tpu.memory_space<vmem>>, vector<1x128xf32>,
    %59 = vector.extract_strided_slice %50 {offsets = [4, 0], sizes = [1, 128], strides = [1, 1]} : vector<8x128xf32> to vector<1x128xf32>
    %c0_49 = arith.constant 0 : index
    %c512 = arith.constant 512 : index
    %60 = vector.load %arg13[%c0_49, %c512] : memref<1x1024xf32, #tpu.memory_space<vmem>>, vector<1x128xf32>
    tpu.vector_store %arg13[%c0_49, %c512], %59 {strides = array<i32>} : memref<1x1024xf32, #tpu.memory_space<vmem>>, vector<1x128xf32>,
    %61 = vector.extract_strided_slice %50 {offsets = [5, 0], sizes = [1, 128], strides = [1, 1]} : vector<8x128xf32> to vector<1x128xf32>
    %c0_50 = arith.constant 0 : index
    %c640 = arith.constant 640 : index
    %62 = vector.load %arg13[%c0_50, %c640] : memref<1x1024xf32, #tpu.memory_space<vmem>>, vector<1x128xf32>
    tpu.vector_store %arg13[%c0_50, %c640], %61 {strides = array<i32>} : memref<1x1024xf32, #tpu.memory_space<vmem>>, vector<1x128xf32>,
    %63 = vector.extract_strided_slice %50 {offsets = [6, 0], sizes = [1, 128], strides = [1, 1]} : vector<8x128xf32> to vector<1x128xf32>
    %c0_51 = arith.constant 0 : index
    %c768 = arith.constant 768 : index
    %64 = vector.load %arg13[%c0_51, %c768] : memref<1x1024xf32, #tpu.memory_space<vmem>>, vector<1x128xf32>
    tpu.vector_store %arg13[%c0_51, %c768], %63 {strides = array<i32>} : memref<1x1024xf32, #tpu.memory_space<vmem>>, vector<1x128xf32>,
    %65 = vector.extract_strided_slice %50 {offsets = [7, 0], sizes = [1, 128], strides = [1, 1]} : vector<8x128xf32> to vector<1x128xf32>
    %c0_52 = arith.constant 0 : index
    %c896 = arith.constant 896 : index
    %66 = vector.load %arg13[%c0_52, %c896] : memref<1x1024xf32, #tpu.memory_space<vmem>>, vector<1x128xf32>
    tpu.vector_store %arg13[%c0_52, %c896], %65 {strides = array<i32>} : memref<1x1024xf32, #tpu.memory_space<vmem>>, vector<1x128xf32>,
    %c0_53 = arith.constant 0 : index
    %c0_54 = arith.constant 0 : index
    %67 = vector.load %arg13[%c0_53, %c0_54] : memref<1x1024xf32, #tpu.memory_space<vmem>>, vector<1x1024xf32>
    %68 = arith.truncf %67 : vector<1x1024xf32> to vector<1x1024xbf16>
    %c0_55 = arith.constant 0 : index
    %c0_56 = arith.constant 0 : index
    %69 = vector.load %arg8[%c0_55, %c0_56] : memref<1024x10xbf16, #tpu.memory_space<vmem>>, vector<1024x10xbf16>
    %cst_57 = arith.constant dense<0.000000e+00> : vector<1x10xf32>
    %70 = tpu.matmul %68, %69, %cst_57 {dimension_numbers = #tpu.dot_dimension_numbers<[1], [0], [0], [1], [0, 0, 1, 1], [], []>} : vector<1x1024xbf16>, vector<1024x10xbf16>, vector<1x10xf32> -> vector<1x10xf32>
    %c0_58 = arith.constant 0 : index
    %c0_59 = arith.constant 0 : index
    %71 = vector.load %arg9[%c0_58, %c0_59] : memref<1x10xf32, #tpu.memory_space<vmem>>, vector<1x10xf32>
    %72 = arith.addf %70, %71 : vector<1x10xf32>
    %c0_60 = arith.constant 0 : index
    %c0_61 = arith.constant 0 : index
    %c0_62 = arith.constant 0 : index
    %73 = vector.load %arg10[%c0_60, %c0_61, %c0_62] : memref<1x1x10xf32, #tpu.memory_space<vmem>>, vector<1x1x10xf32>
    %74 = vector.shape_cast %73 : vector<1x1x10xf32> to vector<1x10xf32>
    %75 = vector.shape_cast %72 : vector<1x10xf32> to vector<1x1x10xf32>
    tpu.vector_store %arg10[%c0_60, %c0_61, %c0_62], %75 {strides = array<i32>} : memref<1x1x10xf32, #tpu.memory_space<vmem>>, vector<1x1x10xf32>,
    return
  }
  func.func @transform_0(%arg0: i32) -> (i32, i32, i32) {
    %c0_i32 = arith.constant 0 : i32
    %c0_i32_0 = arith.constant 0 : i32
    %c0_i32_1 = arith.constant 0 : i32
    return %arg0, %c0_i32, %c0_i32_0 : i32, i32, i32
  }
  func.func @transform_1(%arg0: i32) -> (i32, i32) {
    %c0_i32 = arith.constant 0 : i32
    %c0_i32_0 = arith.constant 0 : i32
    %c0_i32_1 = arith.constant 0 : i32
    return %c0_i32, %c0_i32_0 : i32, i32
  }
  func.func @transform_2(%arg0: i32) -> (i32, i32) {
    %c0_i32 = arith.constant 0 : i32
    %c0_i32_0 = arith.constant 0 : i32
    %c0_i32_1 = arith.constant 0 : i32
    return %c0_i32, %c0_i32_0 : i32, i32
  }
  func.func @transform_3(%arg0: i32) -> (i32, i32) {
    %c0_i32 = arith.constant 0 : i32
    %c0_i32_0 = arith.constant 0 : i32
    %c0_i32_1 = arith.constant 0 : i32
    return %c0_i32, %c0_i32_0 : i32, i32
  }
  func.func @transform_4(%arg0: i32) -> (i32, i32) {
    %c0_i32 = arith.constant 0 : i32
    %c0_i32_0 = arith.constant 0 : i32
    %c0_i32_1 = arith.constant 0 : i32
    return %c0_i32, %c0_i32_0 : i32, i32
  }
  func.func @transform_5(%arg0: i32) -> (i32, i32) {
    %c0_i32 = arith.constant 0 : i32
    %c0_i32_0 = arith.constant 0 : i32
    %c0_i32_1 = arith.constant 0 : i32
    return %c0_i32, %c0_i32_0 : i32, i32
  }
  func.func @transform_6(%arg0: i32) -> (i32, i32) {
    %c0_i32 = arith.constant 0 : i32
    %c0_i32_0 = arith.constant 0 : i32
    %c0_i32_1 = arith.constant 0 : i32
    return %c0_i32, %c0_i32_0 : i32, i32
  }
  func.func @transform_7(%arg0: i32) -> (i32, i32) {
    %c0_i32 = arith.constant 0 : i32
    %c0_i32_0 = arith.constant 0 : i32
    %c0_i32_1 = arith.constant 0 : i32
    return %c0_i32, %c0_i32_0 : i32, i32
  }
  func.func @transform_8(%arg0: i32) -> (i32, i32) {
    %c0_i32 = arith.constant 0 : i32
    %c0_i32_0 = arith.constant 0 : i32
    %c0_i32_1 = arith.constant 0 : i32
    return %c0_i32, %c0_i32_0 : i32, i32
  }
  func.func @transform_9(%arg0: i32) -> (i32, i32, i32) {
    %c0_i32 = arith.constant 0 : i32
    %c0_i32_0 = arith.constant 0 : i32
    %c0_i32_1 = arith.constant 0 : i32
    return %arg0, %c0_i32, %c0_i32_0 : i32, i32, i32
  }
}

</mosaic_0001>

<llo_original>
// kernel: forward.1
$region0: #{forward.1}
  #allocation0 [shape = 'u32[]', space=smem, size = 0x4, offset = 0x4, fixed_abs, tag = 'smem constant byte address 0x4 - core index']
  #allocation1 [shape = 'u32[144,128]{1,0:T(1,128)}', space=vmem, size = 0x12000, scoped, tag = 'internal scratch']
  #allocation2 [shape = 'f32[16,192]{1,0:T(8,128)}', space=vmem, size = 0x4000, scoped, tag = 'scratch operand']
  #allocation3 [shape = 'f32[8,192]{1,0:T(8,128)}', space=vmem, size = 0x2000, scoped, tag = 'scratch operand']
  #allocation4 [shape = 'f32[1,1024]{1,0:T(1,128)}', space=vmem, size = 0x1000, scoped, tag = 'scratch operand']
  %s0 = inlined_call_operand.vmem [shape: f32[2,16,64], index: 0, kind: input, shape index: {}]
  %s1 = inlined_call_operand.vmem [shape: bf16[192,128], index: 1, kind: input, shape index: {}]
  %s2 = inlined_call_operand.vmem [shape: f32[1,128], index: 2, kind: input, shape index: {}]
  %s3 = inlined_call_operand.vmem [shape: f32[16,16], index: 3, kind: input, shape index: {}]
  %s4 = inlined_call_operand.vmem [shape: f32[128,128], index: 4, kind: input, shape index: {}]
  %s5 = inlined_call_operand.vmem [shape: bf16[192,128], index: 5, kind: input, shape index: {}]
  %s6 = inlined_call_operand.vmem [shape: f32[1,128], index: 6, kind: input, shape index: {}]
  %s7 = inlined_call_operand.hbm [shape: bf16[1024,10], index: 7, kind: input, shape index: {}]
  %s8 = inlined_call_operand.vmem [shape: f32[1,10], index: 8, kind: input, shape index: {}]
  %s9 = inlined_call_operand.hbm [shape: f32[2,1,10], index: 9, kind: output, shape index: {}]
  %s10 = sld [smem:[#allocation0]]
  $region73: #{forward.1} parent=0
    _
  %s12 = ssub.s32 1, %s10
  %s13 = scalar_select 0, %s12, %s10
  $region1: #{forward.1} parent=0
    #allocation5 [shape = 'u8[262144]{0}', space=vmem, size = 0x40000, scoped, tag = 'input window, operand 7, single buffered']
    #allocation6 [shape = 's32[2]{0}', space=sflag, size = 0x8, scoped, tag = 'scoped memory for forward.1']
    #allocation7 [shape = 's32[2]{0}', space=sflag, size = 0x8, scoped, tag = 'scoped memory for forward.1']
    #allocation8 [shape = 'u8[1024]{0}', space=vmem, size = 0x400, scoped, tag = 'output window, operand 0']
    %14 = vsyncpa [#allocation6], 0
    %15 = vsyncpa [#allocation7], 0
    %s16 = scalar_lea.sflag [#allocation7], 1
    %17 = vsyncpa %s16, 0
    loop: start=0, step=1, limit=4
    $region2: #{forward.1} parent=1 // loop_pre_header
      _
    $region3: #{forward.1} parent=1 // loop_header
      %s19 = sphi 0, %s23
      %p20 = scmp.ge.s32.totalorder %s19, 4
      %s29 = sphi 0, %s31
      %s32 = sphi 0, %s29
      %s33 = sphi 0, %s32
      %s49 = sphi 0, %s33
      %s53 = sphi 0, %s53
      %s55 = sphi 0, %s53
      %s56 = sphi 0, %s55
      %s70 = sphi 0, %s56
      %s74 = sphi 0, %s74
      %s76 = sphi 0, %s74
      %s77 = sphi 0, %s76
      %s91 = sphi 0, %s77
      %s95 = sphi 0, %s95
      %s97 = sphi 0, %s95
      %s98 = sphi 0, %s97
      %s112 = sphi 0, %s98
      %s116 = sphi 0, %s116
      %s118 = sphi 0, %s116
      %s119 = sphi 0, %s118
      %s133 = sphi 0, %s119
      %s137 = sphi 0, %s137
      %s139 = sphi 0, %s137
      %s140 = sphi 0, %s139
      %s154 = sphi 0, %s140
      %s158 = sphi 0, %s158
      %s160 = sphi 0, %s158
      %s161 = sphi 0, %s160
      %s175 = sphi 0, %s161
      %s179 = sphi 0, %s179
      %s181 = sphi 0, %s179
      %s182 = sphi 0, %s181
      %s196 = sphi 0, %s182
      %s200 = sphi 0, %s200
      %s202 = sphi 0, %s200
      %s203 = sphi 0, %s202
      %s217 = sphi 0, %s203
      %s223 = sphi 0, %s225
      %s226 = sphi 0, %s223
      %s227 = sphi 0, %s226
      %s243 = sphi 0, %s227
    $region4: #{forward.1} parent=1 // loop_header_branch
      %22 = sbr.rel (%p20) target = $region8
    $region5: #{forward.1} parent=1 // loop_body
      %s24 = ssub.s32 %s19, 1
      %s25 = ssub.s32 %s19, 2
      %s26 = sadd.s32 %s19, 1
      %s27 = ssub.s32 %s19, %s26
      %p28 = scmp.eq.s32.totalorder %s27, 0
      %s30 = sadd.s32 %s29, 1
      %s31 = scalar_select %p28, %s29, %s30
      %p34 = pneg %p28
      %p35 = scmp.eq.s32.totalorder %s19, 1
      %p36 = por %p34, %p35
      %p37 = scmp.ne.s32.totalorder %s29, %s32
      %p38 = scmp.eq.s32.totalorder %s19, 0
      %p39 = por %p37, %p38
      %p40 = scmp.ne.s32.totalorder %s29, %s32
      %p41 = scmp.eq.s32.totalorder %s24, 1
      %p42 = por %p40, %p41
      %p43 = scmp.ne.s32.totalorder %s32, %s33
      %p44 = scmp.eq.s32.totalorder %s24, 0
      %p45 = por %p43, %p44
      %p46 = scmp.ne.s32.totalorder %s32, %s33
      %p47 = scmp.eq.s32.totalorder %s25, 1
      %p48 = por %p46, %p47
      %p50 = scmp.ne.s32.totalorder %s33, %s49
      %p51 = scmp.eq.s32.totalorder %s25, 0
      %p52 = por %p50, %p51
      %s54 = sadd.s32 %s53, 1
      %p57 = scmp.eq.s32.totalorder %s19, 1
      %p58 = scmp.ne.s32.totalorder %s53, %s55
      %p59 = scmp.eq.s32.totalorder %s19, 0
      %p60 = por %p58, %p59
      %p61 = scmp.ne.s32.totalorder %s53, %s55
      %p62 = scmp.eq.s32.totalorder %s24, 1
      %p63 = por %p61, %p62
      %p64 = scmp.ne.s32.totalorder %s55, %s56
      %p65 = scmp.eq.s32.totalorder %s24, 0
      %p66 = por %p64, %p65
      %p67 = scmp.ne.s32.totalorder %s55, %s56
      %p68 = scmp.eq.s32.totalorder %s25, 1
      %p69 = por %p67, %p68
      %p71 = scmp.ne.s32.totalorder %s56, %s70
      %p72 = scmp.eq.s32.totalorder %s25, 0
      %p73 = por %p71, %p72
      %s75 = sadd.s32 %s74, 1
      %p78 = scmp.eq.s32.totalorder %s19, 1
      %p79 = scmp.ne.s32.totalorder %s74, %s76
      %p80 = scmp.eq.s32.totalorder %s19, 0
      %p81 = por %p79, %p80
      %p82 = scmp.ne.s32.totalorder %s74, %s76
      %p83 = scmp.eq.s32.totalorder %s24, 1
      %p84 = por %p82, %p83
      %p85 = scmp.ne.s32.totalorder %s76, %s77
      %p86 = scmp.eq.s32.totalorder %s24, 0
      %p87 = por %p85, %p86
      %p88 = scmp.ne.s32.totalorder %s76, %s77
      %p89 = scmp.eq.s32.totalorder %s25, 1
      %p90 = por %p88, %p89
      %p92 = scmp.ne.s32.totalorder %s77, %s91
      %p93 = scmp.eq.s32.totalorder %s25, 0
      %p94 = por %p92, %p93
      %s96 = sadd.s32 %s95, 1
      %p99 = scmp.eq.s32.totalorder %s19, 1
      %p100 = scmp.ne.s32.totalorder %s95, %s97
      %p101 = scmp.eq.s32.totalorder %s19, 0
      %p102 = por %p100, %p101
      %p103 = scmp.ne.s32.totalorder %s95, %s97
      %p104 = scmp.eq.s32.totalorder %s24, 1
      %p105 = por %p103, %p104
      %p106 = scmp.ne.s32.totalorder %s97, %s98
      %p107 = scmp.eq.s32.totalorder %s24, 0
      %p108 = por %p106, %p107
      %p109 = scmp.ne.s32.totalorder %s97, %s98
      %p110 = scmp.eq.s32.totalorder %s25, 1
      %p111 = por %p109, %p110
      %p113 = scmp.ne.s32.totalorder %s98, %s112
      %p114 = scmp.eq.s32.totalorder %s25, 0
      %p115 = por %p113, %p114
      %s117 = sadd.s32 %s116, 1
      %p120 = scmp.eq.s32.totalorder %s19, 1
      %p121 = scmp.ne.s32.totalorder %s116, %s118
      %p122 = scmp.eq.s32.totalorder %s19, 0
      %p123 = por %p121, %p122
      %p124 = scmp.ne.s32.totalorder %s116, %s118
      %p125 = scmp.eq.s32.totalorder %s24, 1
      %p126 = por %p124, %p125
      %p127 = scmp.ne.s32.totalorder %s118, %s119
      %p128 = scmp.eq.s32.totalorder %s24, 0
      %p129 = por %p127, %p128
      %p130 = scmp.ne.s32.totalorder %s118, %s119
      %p131 = scmp.eq.s32.totalorder %s25, 1
      %p132 = por %p130, %p131
      %p134 = scmp.ne.s32.totalorder %s119, %s133
      %p135 = scmp.eq.s32.totalorder %s25, 0
      %p136 = por %p134, %p135
      %s138 = sadd.s32 %s137, 1
      %p141 = scmp.eq.s32.totalorder %s19, 1
      %p142 = scmp.ne.s32.totalorder %s137, %s139
      %p143 = scmp.eq.s32.totalorder %s19, 0
      %p144 = por %p142, %p143
      %p145 = scmp.ne.s32.totalorder %s137, %s139
      %p146 = scmp.eq.s32.totalorder %s24, 1
      %p147 = por %p145, %p146
      %p148 = scmp.ne.s32.totalorder %s139, %s140
      %p149 = scmp.eq.s32.totalorder %s24, 0
      %p150 = por %p148, %p149
      %p151 = scmp.ne.s32.totalorder %s139, %s140
      %p152 = scmp.eq.s32.totalorder %s25, 1
      %p153 = por %p151, %p152
      %p155 = scmp.ne.s32.totalorder %s140, %s154
      %p156 = scmp.eq.s32.totalorder %s25, 0
      %p157 = por %p155, %p156
      %s159 = sadd.s32 %s158, 1
      %p162 = scmp.eq.s32.totalorder %s19, 1
      %p163 = scmp.ne.s32.totalorder %s158, %s160
      %p164 = scmp.eq.s32.totalorder %s19, 0
      %p165 = por %p163, %p164
      %p166 = scmp.ne.s32.totalorder %s158, %s160
      %p167 = scmp.eq.s32.totalorder %s24, 1
      %p168 = por %p166, %p167
      %p169 = scmp.ne.s32.totalorder %s160, %s161
      %p170 = scmp.eq.s32.totalorder %s24, 0
      %p171 = por %p169, %p170
      %p172 = scmp.ne.s32.totalorder %s160, %s161
      %p173 = scmp.eq.s32.totalorder %s25, 1
      %p174 = por %p172, %p173
      %p176 = scmp.ne.s32.totalorder %s161, %s175
      %p177 = scmp.eq.s32.totalorder %s25, 0
      %p178 = por %p176, %p177
      %s180 = sadd.s32 %s179, 1
      %p183 = scmp.eq.s32.totalorder %s19, 1
      %p184 = scmp.ne.s32.totalorder %s179, %s181
      %p185 = scmp.eq.s32.totalorder %s19, 0
      %p186 = por %p184, %p185
      %p187 = scmp.ne.s32.totalorder %s179, %s181
      %p188 = scmp.eq.s32.totalorder %s24, 1
      %p189 = por %p187, %p188
      %p190 = scmp.ne.s32.totalorder %s181, %s182
      %p191 = scmp.eq.s32.totalorder %s24, 0
      %p192 = por %p190, %p191
      %p193 = scmp.ne.s32.totalorder %s181, %s182
      %p194 = scmp.eq.s32.totalorder %s25, 1
      %p195 = por %p193, %p194
      %p197 = scmp.ne.s32.totalorder %s182, %s196
      %p198 = scmp.eq.s32.totalorder %s25, 0
      %p199 = por %p197, %p198
      %s201 = sadd.s32 %s200, 1
      %p204 = scmp.eq.s32.totalorder %s19, 1
      %p205 = scmp.ne.s32.totalorder %s200, %s202
      %p206 = scmp.eq.s32.totalorder %s19, 0
      %p207 = por %p205, %p206
      %p208 = scmp.ne.s32.totalorder %s200, %s202
      %p209 = scmp.eq.s32.totalorder %s24, 1
      %p210 = por %p208, %p209
      %p211 = scmp.ne.s32.totalorder %s202, %s203
      %p212 = scmp.eq.s32.totalorder %s24, 0
      %p213 = por %p211, %p212
      %p214 = scmp.ne.s32.totalorder %s202, %s203
      %p215 = scmp.eq.s32.totalorder %s25, 1
      %p216 = por %p214, %p215
      %p218 = scmp.ne.s32.totalorder %s203, %s217
      %p219 = scmp.eq.s32.totalorder %s25, 0
      %p220 = por %p218, %p219
      %s221 = ssub.s32 %s19, %s26
      %p222 = scmp.eq.s32.totalorder %s221, 0
      %s224 = sadd.s32 %s223, 1
      %s225 = scalar_select %p222, %s223, %s224
      %p228 = pneg %p222
      %p229 = scmp.eq.s32.totalorder %s19, 1
      %p230 = por %p228, %p229
      %p231 = scmp.ne.s32.totalorder %s223, %s226
      %p232 = scmp.eq.s32.totalorder %s19, 0
      %p233 = por %p231, %p232
      %p234 = scmp.ne.s32.totalorder %s223, %s226
      %p235 = scmp.eq.s32.totalorder %s24, 1
      %p236 = por %p234, %p235
      %p237 = scmp.ne.s32.totalorder %s226, %s227
      %p238 = scmp.eq.s32.totalorder %s24, 0
      %p239 = por %p237, %p238
      %p240 = scmp.ne.s32.totalorder %s226, %s227
      %p241 = scmp.eq.s32.totalorder %s25, 1
      %p242 = por %p240, %p241
      %p244 = scmp.ne.s32.totalorder %s227, %s243
      %p245 = scmp.eq.s32.totalorder %s25, 0
      %p246 = por %p244, %p245
      %p247 = scmp.le.s32.totalorder 1, %s19
      %p248 = scmp.lt.s32.totalorder %s19, 3
      %p249 = pnand %p247, %p248
      %p250 = pneg %p249
      // Predicated region
      $region9: #{forward.1} parent=5 // pred_check
        _
      $region10: #{forward.1} parent=5 // pred_check_branch
        %252 = sbr.rel (%p249) target = $region12
      $region11: #{forward.1} parent=5 // pred_region
        %s253 = ssub.s32 %s19, 1
        // Predicated region
        $region13: #{forward.1} parent=11 // pred_check
          %p254 = pneg %p66
        $region14: #{forward.1} parent=11 // pred_check_branch
          %256 = sbr.rel (%p254) target = $region16
        $region15: #{forward.1} parent=11 // pred_region
          _
        $region16: #{forward.1} parent=11 // pred_fallthru
          _
        // Predicated region
        $region17: #{forward.1} parent=11 // pred_check
          %p257 = pneg %p87
        $region18: #{forward.1} parent=11 // pred_check_branch
          %259 = sbr.rel (%p257) target = $region20
        $region19: #{forward.1} parent=11 // pred_region
          _
        $region20: #{forward.1} parent=11 // pred_fallthru
          _
        // Predicated region
        $region21: #{forward.1} parent=11 // pred_check
          %p260 = pneg %p108
        $region22: #{forward.1} parent=11 // pred_check_branch
          %262 = sbr.rel (%p260) target = $region24
        $region23: #{forward.1} parent=11 // pred_region
          _
        $region24: #{forward.1} parent=11 // pred_fallthru
          _
        // Predicated region
        $region25: #{forward.1} parent=11 // pred_check
          %p263 = pneg %p129
        $region26: #{forward.1} parent=11 // pred_check_branch
          %265 = sbr.rel (%p263) target = $region28
        $region27: #{forward.1} parent=11 // pred_region
          _
        $region28: #{forward.1} parent=11 // pred_fallthru
          _
        // Predicated region
        $region29: #{forward.1} parent=11 // pred_check
          %p266 = pneg %p150
        $region30: #{forward.1} parent=11 // pred_check_branch
          %268 = sbr.rel (%p266) target = $region32
        $region31: #{forward.1} parent=11 // pred_region
          _
        $region32: #{forward.1} parent=11 // pred_fallthru
          _
        // Predicated region
        $region33: #{forward.1} parent=11 // pred_check
          %p269 = pneg %p171
        $region34: #{forward.1} parent=11 // pred_check_branch
          %271 = sbr.rel (%p269) target = $region36
        $region35: #{forward.1} parent=11 // pred_region
          _
        $region36: #{forward.1} parent=11 // pred_fallthru
          _
        // Predicated region
        $region37: #{forward.1} parent=11 // pred_check
          %p272 = pneg %p192
        $region38: #{forward.1} parent=11 // pred_check_branch
          %274 = sbr.rel (%p272) target = $region40
        $region39: #{forward.1} parent=11 // pred_region
          %s276 = ssub.s32 8192, 8192
          %277 = vsyncadd [#allocation6], %s276
          %s278 = sshll.u32 [#allocation5], 4
          %s279 = int_to_ptr.vmem [resolvable:$true] %s278
          %284 = dma.hbm_to_vmem [thread:$0]  %s7, 8192, %s279, [#allocation6], 64, 64, 4
        $region40: #{forward.1} parent=11 // pred_fallthru
          _
        // Predicated region
        $region41: #{forward.1} parent=11 // pred_check
          %p285 = pneg %p213
        $region42: #{forward.1} parent=11 // pred_check_branch
          %287 = sbr.rel (%p285) target = $region44
        $region43: #{forward.1} parent=11 // pred_region
          _
        $region44: #{forward.1} parent=11 // pred_fallthru
          _
      $region12: #{forward.1} parent=5 // pred_fallthru
        _
      %p288 = scmp.lt.s32.totalorder %s19, 2
      // Predicated region
      $region45: #{forward.1} parent=5 // pred_check
        %p289 = pneg %p288
      $region46: #{forward.1} parent=5 // pred_check_branch
        %291 = sbr.rel (%p289) target = $region48
      $region47: #{forward.1} parent=5 // pred_region
        // Predicated region
        $region49: #{forward.1} parent=47 // pred_check
          %p292 = pneg %p39
        $region50: #{forward.1} parent=47 // pred_check_branch
          %294 = sbr.rel (%p292) target = $region52
        $region51: #{forward.1} parent=47 // pred_region
          %p295 = scmp.lt.s32.totalorder %s19, 1
          %s296 = scalar_select %p295, %s19, 1
          %s297 = smul.addr %s296, 2
          %s298 = smul.addr %s297, 8
          %s299 = scalar_lea.vmem %s0, %s298
        $region52: #{forward.1} parent=47 // pred_fallthru
          _
      $region48: #{forward.1} parent=5 // pred_fallthru
        _
      %p300 = scmp.le.s32.totalorder 1, %s19
      %p301 = scmp.lt.s32.totalorder %s19, 3
      %p302 = pnand %p300, %p301
      %p303 = pneg %p302
      // Predicated region
      $region53: #{forward.1} parent=5 // pred_check
        _
      $region54: #{forward.1} parent=5 // pred_check_branch
        %305 = sbr.rel (%p302) target = $region56
      $region55: #{forward.1} parent=5 // pred_region
        %s306 = ssub.s32 %s19, 1
        // Predicated region
        $region57: #{forward.1} parent=55 // pred_check
          %p307 = pneg %p192
        $region58: #{forward.1} parent=55 // pred_check_branch
          %309 = sbr.rel (%p307) target = $region60
        $region59: #{forward.1} parent=55 // pred_region
          %310 = dma.done [#allocation6], 8192
        $region60: #{forward.1} parent=55 // pred_fallthru
          _
        %p311 = scmp.lt.s32.totalorder %s24, 1
        %s312 = scalar_select %p311, %s24, 1
        %s313 = smul.addr %s312, 2
        %s314 = smul.addr %s313, 8
        %s315 = scalar_lea.vmem %s0, %s314
        %p316 = pneg %p45
        %p317 = pneg %p42
        %p318 = pneg %p66
        %p319 = pneg %p63
        %p320 = pneg %p87
        %p321 = pneg %p84
        %p322 = pneg %p108
        %p323 = pneg %p105
        %p324 = pneg %p129
        %p325 = pneg %p126
        %p326 = pneg %p150
        %p327 = pneg %p147
        %p328 = pneg %p171
        %p329 = pneg %p168
        %p330 = pneg %p192
        %p331 = pneg %p189
        %p332 = pneg %p213
        %p333 = pneg %p210
        %p334 = pneg %p239
        %p335 = pneg %p236
        %s336 = sand.u32 %s226, 1
        %s337 = scalar_lea.sflag [#allocation7], %s336
        %s338 = sand.u32 %s226, 1
        %s339 = scalar_lea.vmem [#allocation8], %s338
        %p340 = scmp.lt.s32.totalorder %s24, 1
        %s341 = scalar_select %p340, %s24, 1
        %s342 = smul.addr %s341, 2
        %s343 = smul.addr %s342, 8
        %s344 = scalar_lea.vmem %s0, %s343
        %v346 = vld [vmem:[%s344] sm:$0xff]
        %v347 = vld [vmem:[%s344 + $0x8] sm:$0xff]
        %vm350 = vcmask 1040384
        %v351 = vrot.slane %v346, 7
        %v352 = vrot.slane %v347, 7
        %v353 = vsel %vm350, %v351, %v352
        %vm356 = vcmask 523265
        %357 = vst.msk [vmem:[#allocation2] sm:$0xfe] %vm356, %v351
        %vm358 = vcmask 523264
        %359 = vst.msk [vmem:[#allocation2 + $0x10] sm:$0xff] %vm358, %v353
        %vm360 = vcmask 516096
        %361 = vst.msk [vmem:[#allocation2] sm:$0x1] %vm360, 0.0
        %362 = vrot.lane.b32.xlu0 %v346, 64
        %v363 = vpop.permute.xlu0 %362
        %364 = vrot.lane.b32.xlu0 %v347, 64
        %v365 = vpop.permute.xlu0 %364
        %vm368 = vcmask 1048064
        %369 = vst.msk [vmem:[#allocation2] sm:$0xff] %vm368, %v363
        %370 = vst.msk [vmem:[#allocation2 + $0x10] sm:$0xff] %vm368, %v365
        %vm371 = vcmask 1046528
        %v372 = vrot.slane %v346, 1
        %v373 = vrot.slane %v347, 1
        %v374 = vsel %vm371, %v372, %v373
        %377 = vst.msk [vmem:[#allocation2 + $0x8] sm:$0xff] %vm358, %v374
        %vm378 = vcmask 522240
        %379 = vst.msk [vmem:[#allocation2 + $0x18] sm:$0x7f] %vm378, %v373
        %380 = vst.msk [vmem:[#allocation2 + $0x1f] sm:$0x1] %vm360, 0.0
        %v381 = vld [vmem:[#allocation2] sm:$0xff]
        %v382 = vld [vmem:[#allocation2 + $0x8] sm:$0xff]
        %v383 = vld [vmem:[#allocation2 + $0x10] sm:$0xff]
        %v384 = vld [vmem:[#allocation2 + $0x18] sm:$0xff]
        %v385 = vpack.c.bf16 %v383, %v381
        %v386 = vpack.c.bf16 %v384, %v382
        %v387 = vld [vmem:[%s1] sm:$0xf]
        %v388 = vld [vmem:[%s1 + $0x4] sm:$0xf]
        %v389 = vld [vmem:[%s1 + $0x8] sm:$0xf]
        %v390 = vld [vmem:[%s1 + $0xc] sm:$0xf]
        %v391 = vld [vmem:[%s1 + $0x10] sm:$0xf]
        %v392 = vld [vmem:[%s1 + $0x14] sm:$0xf]
        %v393 = vld [vmem:[%s1 + $0x18] sm:$0xf]
        %v394 = vld [vmem:[%s1 + $0x1c] sm:$0xf]
        %v395 = vld [vmem:[%s1 + $0x20] sm:$0xf]
        %v396 = vld [vmem:[%s1 + $0x24] sm:$0xf]
        %v397 = vld [vmem:[%s1 + $0x28] sm:$0xf]
        %v398 = vld [vmem:[%s1 + $0x2c] sm:$0xf]
        %v399 = vld [vmem:[%s1 + $0x30] sm:$0xf]
        %v400 = vld [vmem:[%s1 + $0x34] sm:$0xf]
        %v401 = vld [vmem:[%s1 + $0x38] sm:$0xf]
        %v402 = vld [vmem:[%s1 + $0x3c] sm:$0xf]
        %v403 = vld [vmem:[%s1 + $0x40] sm:$0xf]
        %v404 = vld [vmem:[%s1 + $0x44] sm:$0xf]
        %v405 = vld [vmem:[%s1 + $0x48] sm:$0xf]
        %v406 = vld [vmem:[%s1 + $0x4c] sm:$0xf]
        %v407 = vld [vmem:[%s1 + $0x50] sm:$0xf]
        %v408 = vld [vmem:[%s1 + $0x54] sm:$0xf]
        %v409 = vld [vmem:[%s1 + $0x58] sm:$0xf]
        %v410 = vld [vmem:[%s1 + $0x5c] sm:$0xf]
        %v411 = vld [vmem:[%s2] sm:$0x1]
        %v413 = vlaneseq
        %v414 = vshrl.u32 %v413, 7
        %v415 = vsub.s32 0, %v414
        %v416 = vrot.slane %v411, %v415
        %v442 = vunpack.c.l.b16 %v387
        %v443 = vunpack.c.l.b16 %v388
        %v444 = vunpack.c.l.b16 %v389
        %v445 = vunpack.c.l.b16 %v390
        %v446 = vunpack.c.l.b16 %v391
        %v447 = vunpack.c.l.b16 %v392
        %v448 = vunpack.c.l.b16 %v393
        %v449 = vunpack.c.l.b16 %v394
        %v450 = vunpack.c.l.b16 %v395
        %v451 = vunpack.c.l.b16 %v396
        %v452 = vunpack.c.l.b16 %v397
        %v453 = vunpack.c.l.b16 %v398
        %v454 = vunpack.c.l.b16 %v399
        %v455 = vunpack.c.l.b16 %v400
        %v456 = vunpack.c.l.b16 %v401
        %v457 = vunpack.c.l.b16 %v402
        %v458 = vunpack.c.l.b16 %v403
        %v459 = vunpack.c.l.b16 %v404
        %v460 = vunpack.c.l.b16 %v405
        %v461 = vunpack.c.l.b16 %v406
        %v462 = vunpack.c.l.b16 %v407
        %v463 = vunpack.c.l.b16 %v408
        %v464 = vunpack.c.l.b16 %v409
        %v465 = vunpack.c.l.b16 %v410
        %v466 = vpack.c.b16 %v443, %v442
        %v467 = vpack.c.b16 %v445, %v444
        %v468 = vpack.c.b16 %v447, %v446
        %v469 = vpack.c.b16 %v449, %v448
        %v470 = vpack.c.b16 %v451, %v450
        %v471 = vpack.c.b16 %v453, %v452
        %v472 = vpack.c.b16 %v455, %v454
        %v473 = vpack.c.b16 %v457, %v456
        %v474 = vpack.c.b16 %v459, %v458
        %v475 = vpack.c.b16 %v461, %v460
        %v476 = vpack.c.b16 %v463, %v462
        %v477 = vpack.c.b16 %v465, %v464
        %v491 = vsel %vm358, %v386, 0
        %493 = vmatprep.subr.bf16.mxu0 0
        %494 = vmatpush1.bf16.msra.mxu0 %v466
        %495 = vmatprep.subr.bf16.mxu0 0
        %496 = vmatpush1.bf16.msra.mxu0 %v467
        %497 = vmatprep.subr.bf16.mxu0 0
        %498 = vmatpush1.bf16.msra.mxu0 %v468
        %499 = vmatprep.subr.bf16.mxu0 0
        %500 = vmatpush1.bf16.msra.mxu0 %v469
        %501 = vmatprep.subr.bf16.mxu0 0
        %502 = vmatpush1.bf16.msra.mxu0 %v470
        %503 = vmatprep.subr.bf16.mxu0 0
        %504 = vmatpush1.bf16.msra.mxu0 %v471
        %505 = vmatprep.subr.bf16.mxu0 0
        %506 = vmatpush1.bf16.msra.mxu0 %v472
        %507 = vmatprep.subr.bf16.mxu0 0
        %508 = vmatpush1.bf16.msra.mxu0 %v473
        %509 = vmatprep.subr.bf16.mxu0 0
        %510 = vmatpush1.bf16.msra.mxu0 %v474
        %511 = vmatprep.subr.bf16.mxu0 0
        %512 = vmatpush1.bf16.msra.mxu0 %v475
        %513 = vmatprep.subr.bf16.mxu0 0
        %514 = vmatpush1.bf16.msra.mxu0 %v476
        %515 = vmatprep.subr.bf16.mxu0 0
        %516 = vmatpush1.bf16.msra.mxu0 %v477
        %517 = vmatprep.subr.bf16.mxu0 0
        %518 = vmatpush1.bf16.msra.mxu0 0
        %519 = vmatprep.subr.bf16.mxu0 0
        %520 = vmatpush1.bf16.msra.mxu0 0
        %521 = vmatprep.subr.bf16.mxu0 0
        %522 = vmatpush1.bf16.msra.mxu0 0
        %523 = vmatprep.subr.bf16.mxu0 0
        %524 = vmatpush1.bf16.msra.mxu0 0
        %525 = vmatprep.mubr.bf16.mxu0 %v491
        %526 = vmatmul.mubr.bf16.gmra.mrb[0].mxu0 %v385
        %v527 = vpop.f32.mrb[0].mxu0
        %v528 = vadd.f32 %v416, %v527
        %v529 = vpop.f32.mrb[0].mxu0
        %v530 = vpop.f32.mrb[0].mxu0
        %v531 = vadd.f32 %v416, %v530
        %v532 = vpop.f32.mrb[0].mxu0
        %533 = vdwg.mxu0
        %v534 = vmax.f32 %v528, 0.0
        %v535 = vmax.f32 %v531, 0.0
        %v536 = vld [vmem:[%s3] sm:$0xff]
        %v537 = vld [vmem:[%s3 + $0x8] sm:$0xff]
        %vm538 = vcmask 130048
        %v540 = vsel %vm538, %v536, 0
        %v543 = vsel %vm538, %v537, 0
        %545 = vmatprep.subr.mxu0 0.0
        %546 = vmatpush1.msra.mxu0 %v534
        %547 = vmatprep.subr.mxu0 0.0
        %548 = vmatpush1.msra.mxu0 %v535
        %549 = vmatprep.subr.mxu0 0.0
        %550 = vmatpush1.msra.mxu0 0.0
        %551 = vmatprep.subr.mxu0 0.0
        %552 = vmatpush1.msra.mxu0 0.0
        %553 = vmatprep.subr.mxu0 0.0
        %554 = vmatpush1.msra.mxu0 0.0
        %555 = vmatprep.subr.mxu0 0.0
        %556 = vmatpush1.msra.mxu0 0.0
        %557 = vmatprep.subr.mxu0 0.0
        %558 = vmatpush1.msra.mxu0 0.0
        %559 = vmatprep.subr.mxu0 0.0
        %560 = vmatpush1.msra.mxu0 0.0
        %561 = vmatprep.subr.mxu0 0.0
        %562 = vmatpush1.msra.mxu0 0.0
        %563 = vmatprep.subr.mxu0 0.0
        %564 = vmatpush1.msra.mxu0 0.0
        %565 = vmatprep.subr.mxu0 0.0
        %566 = vmatpush1.msra.mxu0 0.0
        %567 = vmatprep.subr.mxu0 0.0
        %568 = vmatpush1.msra.mxu0 0.0
        %569 = vmatprep.subr.mxu0 0.0
        %570 = vmatpush1.msra.mxu0 0.0
        %571 = vmatprep.subr.mxu0 0.0
        %572 = vmatpush1.msra.mxu0 0.0
        %573 = vmatprep.subr.mxu0 0.0
        %574 = vmatpush1.msra.mxu0 0.0
        %575 = vmatprep.subr.mxu0 0.0
        %576 = vmatpush1.msra.mxu0 0.0
        %577 = vmatprep.subr.mxu0 0.0
        %578 = vmatpush1.msra.mxu0 0.0
        %579 = vmatprep.subr.mxu0 0.0
        %580 = vmatpush1.msra.mxu0 0.0
        %581 = vmatprep.subr.mxu0 0.0
        %582 = vmatpush1.msra.mxu0 0.0
        %583 = vmatprep.subr.mxu0 0.0
        %584 = vmatpush1.msra.mxu0 0.0
        %585 = vmatprep.subr.mxu0 0.0
        %586 = vmatpush1.msra.mxu0 0.0
        %587 = vmatprep.subr.mxu0 0.0
        %588 = vmatpush1.msra.mxu0 0.0
        %589 = vmatprep.subr.mxu0 0.0
        %590 = vmatpush1.msra.mxu0 0.0
        %591 = vmatprep.subr.mxu0 0.0
        %592 = vmatpush1.msra.mxu0 0.0
        %593 = vmatprep.subr.mxu0 0.0
        %594 = vmatpush1.msra.mxu0 0.0
        %595 = vmatprep.subr.mxu0 0.0
        %596 = vmatpush1.msra.mxu0 0.0
        %597 = vmatprep.subr.mxu0 0.0
        %598 = vmatpush1.msra.mxu0 0.0
        %599 = vmatprep.subr.mxu0 0.0
        %600 = vmatpush1.msra.mxu0 0.0
        %601 = vmatprep.subr.mxu0 0.0
        %602 = vmatpush1.msra.mxu0 0.0
        %603 = vmatprep.subr.mxu0 0.0
        %604 = vmatpush1.msra.mxu0 0.0
        %605 = vmatprep.subr.mxu0 0.0
        %606 = vmatpush1.msra.mxu0 0.0
        %607 = vmatprep.subr.mxu0 0.0
        %608 = vmatpush1.msra.mxu0 0.0
        %609 = vmatprep.mubr.f32.mxu0 0.0
        %610 = vmatmul.mubr.f32.gmra.mrb[0].mxu0 %v540
        %v611 = vpop.f32.mrb[0].mxu0
        %v612 = vadd.f32 0.0, %v611
        %v613 = vpop.f32.mrb[0].mxu0
        %614 = vmatprep.mubr.f32.mxu0 0.0
        %615 = vmatmul.mubr.f32.gmra.mrb[0].mxu0 %v543
        %v616 = vpop.f32.mrb[0].mxu0
        %v617 = vadd.f32 0.0, %v616
        %v618 = vpop.f32.mrb[0].mxu0
        %619 = vdwg.mxu0
        %v620 = vmax.f32 %v612, %v617
        %v621 = vld [vmem:[%s4] sm:$0xff]
        %v622 = vld [vmem:[%s4 + $0x8] sm:$0xff]
        %v623 = vld [vmem:[%s4 + $0x10] sm:$0xff]
        %v624 = vld [vmem:[%s4 + $0x18] sm:$0xff]
        %v625 = vld [vmem:[%s4 + $0x20] sm:$0xff]
        %v626 = vld [vmem:[%s4 + $0x28] sm:$0xff]
        %v627 = vld [vmem:[%s4 + $0x30] sm:$0xff]
        %v628 = vld [vmem:[%s4 + $0x38] sm:$0xff]
        %v629 = vld [vmem:[%s4 + $0x40] sm:$0xff]
        %v630 = vld [vmem:[%s4 + $0x48] sm:$0xff]
        %v631 = vld [vmem:[%s4 + $0x50] sm:$0xff]
        %v632 = vld [vmem:[%s4 + $0x58] sm:$0xff]
        %v633 = vld [vmem:[%s4 + $0x60] sm:$0xff]
        %v634 = vld [vmem:[%s4 + $0x68] sm:$0xff]
        %v635 = vld [vmem:[%s4 + $0x70] sm:$0xff]
        %v636 = vld [vmem:[%s4 + $0x78] sm:$0xff]
        %637 = vmatprep.subr.mxu0 0.0
        %638 = vmatpush1.msra.mxu0 %v621
        %639 = vmatprep.subr.mxu0 0.0
        %640 = vmatpush1.msra.mxu0 %v622
        %641 = vmatprep.subr.mxu0 0.0
        %642 = vmatpush1.msra.mxu0 %v623
        %643 = vmatprep.subr.mxu0 0.0
        %644 = vmatpush1.msra.mxu0 %v624
        %645 = vmatprep.subr.mxu0 0.0
        %646 = vmatpush1.msra.mxu0 %v625
        %647 = vmatprep.subr.mxu0 0.0
        %648 = vmatpush1.msra.mxu0 %v626
        %649 = vmatprep.subr.mxu0 0.0
        %650 = vmatpush1.msra.mxu0 %v627
        %651 = vmatprep.subr.mxu0 0.0
        %652 = vmatpush1.msra.mxu0 %v628
        %653 = vmatprep.subr.mxu0 0.0
        %654 = vmatpush1.msra.mxu0 %v629
        %655 = vmatprep.subr.mxu0 0.0
        %656 = vmatpush1.msra.mxu0 %v630
        %657 = vmatprep.subr.mxu0 0.0
        %658 = vmatpush1.msra.mxu0 %v631
        %659 = vmatprep.subr.mxu0 0.0
        %660 = vmatpush1.msra.mxu0 %v632
        %661 = vmatprep.subr.mxu0 0.0
        %662 = vmatpush1.msra.mxu0 %v633
        %663 = vmatprep.subr.mxu0 0.0
        %664 = vmatpush1.msra.mxu0 %v634
        %665 = vmatprep.subr.mxu0 0.0
        %666 = vmatpush1.msra.mxu0 %v635
        %667 = vmatprep.subr.mxu0 0.0
        %668 = vmatpush1.msra.mxu0 %v636
        %669 = vmatprep.subr.mxu0 0.0
        %670 = vmatpush1.msra.mxu0 0.0
        %671 = vmatprep.subr.mxu0 0.0
        %672 = vmatpush1.msra.mxu0 0.0
        %673 = vmatprep.subr.mxu0 0.0
        %674 = vmatpush1.msra.mxu0 0.0
        %675 = vmatprep.subr.mxu0 0.0
        %676 = vmatpush1.msra.mxu0 0.0
        %677 = vmatprep.subr.mxu0 0.0
        %678 = vmatpush1.msra.mxu0 0.0
        %679 = vmatprep.subr.mxu0 0.0
        %680 = vmatpush1.msra.mxu0 0.0
        %681 = vmatprep.subr.mxu0 0.0
        %682 = vmatpush1.msra.mxu0 0.0
        %683 = vmatprep.subr.mxu0 0.0
        %684 = vmatpush1.msra.mxu0 0.0
        %685 = vmatprep.subr.mxu0 0.0
        %686 = vmatpush1.msra.mxu0 0.0
        %687 = vmatprep.subr.mxu0 0.0
        %688 = vmatpush1.msra.mxu0 0.0
        %689 = vmatprep.subr.mxu0 0.0
        %690 = vmatpush1.msra.mxu0 0.0
        %691 = vmatprep.subr.mxu0 0.0
        %692 = vmatpush1.msra.mxu0 0.0
        %693 = vmatprep.subr.mxu0 0.0
        %694 = vmatpush1.msra.mxu0 0.0
        %695 = vmatprep.subr.mxu0 0.0
        %696 = vmatpush1.msra.mxu0 0.0
        %697 = vmatprep.subr.mxu0 0.0
        %698 = vmatpush1.msra.mxu0 0.0
        %699 = vmatprep.subr.mxu0 0.0
        %700 = vmatpush1.msra.mxu0 0.0
        %701 = vmatprep.mubr.f32.mxu0 0.0
        %702 = vmatmul.mubr.f32.gmra.mrb[0].mxu0 %v620
        %v703 = vpop.f32.mrb[0].mxu0
        %v704 = vadd.f32 0.0, %v703
        %v705 = vpop.f32.mrb[0].mxu0
        %706 = vdwg.mxu0
        %708 = vrot.lane.b32.xlu0 %v704, 64
        %v709 = vpop.permute.xlu0 %708
        %v711 = vmax.f32 %v704, %v709
        %v713 = vrot.slane %v711, 7
        %715 = vst.msk [vmem:[#allocation3] sm:$0xfe] %vm356, %v713
        %716 = vst.msk [vmem:[#allocation3] sm:$0x1] %vm360, 0.0
        %717 = vrot.lane.b32.xlu0 %v711, 64
        %v718 = vpop.permute.xlu0 %717
        %720 = vst.msk [vmem:[#allocation3] sm:$0xff] %vm368, %v718
        %v721 = vrot.slane %v711, 1
        %723 = vst.msk [vmem:[#allocation3 + $0x8] sm:$0x7f] %vm378, %v721
        %724 = vst.msk [vmem:[#allocation3 + $0xf] sm:$0x1] %vm360, 0.0
        %v725 = vld [vmem:[#allocation3] sm:$0xff]
        %v726 = vld [vmem:[#allocation3 + $0x8] sm:$0xff]
        %v727 = vpack.c.bf16 %v725, %v725
        %v728 = vpack.c.bf16 %v726, %v726
        %v729 = vld [vmem:[%s5] sm:$0xf]
        %v730 = vld [vmem:[%s5 + $0x4] sm:$0xf]
        %v731 = vld [vmem:[%s5 + $0x8] sm:$0xf]
        %v732 = vld [vmem:[%s5 + $0xc] sm:$0xf]
        %v733 = vld [vmem:[%s5 + $0x10] sm:$0xf]
        %v734 = vld [vmem:[%s5 + $0x14] sm:$0xf]
        %v735 = vld [vmem:[%s5 + $0x18] sm:$0xf]
        %v736 = vld [vmem:[%s5 + $0x1c] sm:$0xf]
        %v737 = vld [vmem:[%s5 + $0x20] sm:$0xf]
        %v738 = vld [vmem:[%s5 + $0x24] sm:$0xf]
        %v739 = vld [vmem:[%s5 + $0x28] sm:$0xf]
        %v740 = vld [vmem:[%s5 + $0x2c] sm:$0xf]
        %v741 = vld [vmem:[%s5 + $0x30] sm:$0xf]
        %v742 = vld [vmem:[%s5 + $0x34] sm:$0xf]
        %v743 = vld [vmem:[%s5 + $0x38] sm:$0xf]
        %v744 = vld [vmem:[%s5 + $0x3c] sm:$0xf]
        %v745 = vld [vmem:[%s5 + $0x40] sm:$0xf]
        %v746 = vld [vmem:[%s5 + $0x44] sm:$0xf]
        %v747 = vld [vmem:[%s5 + $0x48] sm:$0xf]
        %v748 = vld [vmem:[%s5 + $0x4c] sm:$0xf]
        %v749 = vld [vmem:[%s5 + $0x50] sm:$0xf]
        %v750 = vld [vmem:[%s5 + $0x54] sm:$0xf]
        %v751 = vld [vmem:[%s5 + $0x58] sm:$0xf]
        %v752 = vld [vmem:[%s5 + $0x5c] sm:$0xf]
        %v753 = vld [vmem:[%s6] sm:$0x1]
        %v755 = vlaneseq
        %v756 = vshrl.u32 %v755, 7
        %v757 = vsub.s32 0, %v756
        %v758 = vrot.slane %v753, %v757
        %v784 = vunpack.c.l.b16 %v729
        %v785 = vunpack.c.l.b16 %v730
        %v786 = vunpack.c.l.b16 %v731
        %v787 = vunpack.c.l.b16 %v732
        %v788 = vunpack.c.l.b16 %v733
        %v789 = vunpack.c.l.b16 %v734
        %v790 = vunpack.c.l.b16 %v735
        %v791 = vunpack.c.l.b16 %v736
        %v792 = vunpack.c.l.b16 %v737
        %v793 = vunpack.c.l.b16 %v738
        %v794 = vunpack.c.l.b16 %v739
        %v795 = vunpack.c.l.b16 %v740
        %v796 = vunpack.c.l.b16 %v741
        %v797 = vunpack.c.l.b16 %v742
        %v798 = vunpack.c.l.b16 %v743
        %v799 = vunpack.c.l.b16 %v744
        %v800 = vunpack.c.l.b16 %v745
        %v801 = vunpack.c.l.b16 %v746
        %v802 = vunpack.c.l.b16 %v747
        %v803 = vunpack.c.l.b16 %v748
        %v804 = vunpack.c.l.b16 %v749
        %v805 = vunpack.c.l.b16 %v750
        %v806 = vunpack.c.l.b16 %v751
        %v807 = vunpack.c.l.b16 %v752
        %v808 = vpack.c.b16 %v785, %v784
        %v809 = vpack.c.b16 %v787, %v786
        %v810 = vpack.c.b16 %v789, %v788
        %v811 = vpack.c.b16 %v791, %v790
        %v812 = vpack.c.b16 %v793, %v792
        %v813 = vpack.c.b16 %v795, %v794
        %v814 = vpack.c.b16 %v797, %v796
        %v815 = vpack.c.b16 %v799, %v798
        %v816 = vpack.c.b16 %v801, %v800
        %v817 = vpack.c.b16 %v803, %v802
        %v818 = vpack.c.b16 %v805, %v804
        %v819 = vpack.c.b16 %v807, %v806
        %v833 = vsel %vm358, %v728, 0
        %835 = vmatprep.subr.bf16.mxu0 0
        %836 = vmatpush1.bf16.msra.mxu0 %v808
        %837 = vmatprep.subr.bf16.mxu0 0
        %838 = vmatpush1.bf16.msra.mxu0 %v809
        %839 = vmatprep.subr.bf16.mxu0 0
        %840 = vmatpush1.bf16.msra.mxu0 %v810
        %841 = vmatprep.subr.bf16.mxu0 0
        %842 = vmatpush1.bf16.msra.mxu0 %v811
        %843 = vmatprep.subr.bf16.mxu0 0
        %844 = vmatpush1.bf16.msra.mxu0 %v812
        %845 = vmatprep.subr.bf16.mxu0 0
        %846 = vmatpush1.bf16.msra.mxu0 %v813
        %847 = vmatprep.subr.bf16.mxu0 0
        %848 = vmatpush1.bf16.msra.mxu0 %v814
        %849 = vmatprep.subr.bf16.mxu0 0
        %850 = vmatpush1.bf16.msra.mxu0 %v815
        %851 = vmatprep.subr.bf16.mxu0 0
        %852 = vmatpush1.bf16.msra.mxu0 %v816
        %853 = vmatprep.subr.bf16.mxu0 0
        %854 = vmatpush1.bf16.msra.mxu0 %v817
        %855 = vmatprep.subr.bf16.mxu0 0
        %856 = vmatpush1.bf16.msra.mxu0 %v818
        %857 = vmatprep.subr.bf16.mxu0 0
        %858 = vmatpush1.bf16.msra.mxu0 %v819
        %859 = vmatprep.subr.bf16.mxu0 0
        %860 = vmatpush1.bf16.msra.mxu0 0
        %861 = vmatprep.subr.bf16.mxu0 0
        %862 = vmatpush1.bf16.msra.mxu0 0
        %863 = vmatprep.subr.bf16.mxu0 0
        %864 = vmatpush1.bf16.msra.mxu0 0
        %865 = vmatprep.subr.bf16.mxu0 0
        %866 = vmatpush1.bf16.msra.mxu0 0
        %867 = vmatprep.mubr.bf16.mxu0 %v833
        %868 = vmatmul.mubr.bf16.gmra.mrb[0].mxu0 %v727
        %v869 = vpop.f32.mrb[0].mxu0
        %v870 = vadd.f32 %v758, %v869
        %v871 = vpop.f32.mrb[0].mxu0
        %v872 = vpop.f32.mrb[0].mxu0
        %v873 = vpop.f32.mrb[0].mxu0
        %874 = vdwg.mxu0
        %vm875 = vcmp.gt.f32.partialorder %v870, 0.0
        %v876 = vmul.f32 %v870, 0.1
        %v877 = vsel %vm875, %v870, %v876
        %v878 = vlaneseq
        %vm879 = vcmp.ge.s32.totalorder %v878, 0
        %vm880 = vcmp.lt.s32.totalorder %v878, 128
        %vm881 = vmand %vm879, %vm880
        %882 = vst.msk [vmem:[#allocation4] sm:$0x1] %vm881, %v877
        %v885 = vunpack.c.l.s4 1966171168
        %v886 = vunpack.c.0.s8 %v885
        %v887 = vlaneseq
        %v888 = vshrl.u32 %v887, 7
        %v889 = vsub.s32 %v886, %v888
        %v890 = vrot.slane %v877, %v889
        %v891 = vcombine.high %v890, %v890
        %v893 = vunpack.c.l.s4 1966171168
        %v894 = vunpack.c.0.s8 %v893
        %v895 = vlaneseq
        %v896 = vshrl.u32 %v895, 7
        %v897 = vsub.s32 %v894, %v896
        %v898 = vrot.slane %v890, %v897
        %v900 = vunpack.c.l.s4 1966171168
        %v901 = vunpack.c.0.s8 %v900
        %v902 = vlaneseq
        %v903 = vshrl.u32 %v902, 7
        %v904 = vsub.s32 %v901, %v903
        %v905 = vrot.slane %v891, %v904
        %907 = vst.msk [vmem:[#allocation4 + $0x1] sm:$0x1] %vm881, %v905
        %v908 = vcombine.high %v898, %v898
        %910 = vst.msk [vmem:[#allocation4 + $0x2] sm:$0x1] %vm881, %v908
        %v911 = vcombine.high %v905, %v905
        %913 = vst.msk [vmem:[#allocation4 + $0x3] sm:$0x1] %vm881, %v911
        %v914 = vcombine.high %v877, %v877
        %v916 = vunpack.c.l.s4 1966171168
        %v917 = vunpack.c.0.s8 %v916
        %v918 = vlaneseq
        %v919 = vshrl.u32 %v918, 7
        %v920 = vsub.s32 %v917, %v919
        %v921 = vrot.slane %v914, %v920
        %v923 = vunpack.c.l.s4 1966171168
        %v924 = vunpack.c.0.s8 %v923
        %v925 = vlaneseq
        %v926 = vshrl.u32 %v925, 7
        %v927 = vsub.s32 %v924, %v926
        %v928 = vrot.slane %v921, %v927
        %930 = vst.msk [vmem:[#allocation4 + $0x4] sm:$0x1] %vm881, %v928
        %v931 = vcombine.high %v921, %v921
        %v933 = vunpack.c.l.s4 1966171168
        %v934 = vunpack.c.0.s8 %v933
        %v935 = vlaneseq
        %v936 = vshrl.u32 %v935, 7
        %v937 = vsub.s32 %v934, %v936
        %v938 = vrot.slane %v931, %v937
        %940 = vst.msk [vmem:[#allocation4 + $0x5] sm:$0x1] %vm881, %v938
        %v941 = vcombine.high %v928, %v928
        %943 = vst.msk [vmem:[#allocation4 + $0x6] sm:$0x1] %vm881, %v941
        %v944 = vcombine.high %v938, %v938
        %946 = vst.msk [vmem:[#allocation4 + $0x7] sm:$0x1] %vm881, %v944
        %v947 = vld [vmem:[#allocation4] sm:$0xff]
        %v949 = vlaneseq
        %v950 = vshrl.u32 %v949, 7
        %v951 = vsub.s32 0, %v950
        %v952 = vrot.slane %v947, %v951
        %v953 = vlaneseq
        %v954 = vshrl.u32 %v953, 7
        %v955 = vsub.s32 1, %v954
        %v956 = vrot.slane %v947, %v955
        %v957 = vlaneseq
        %v958 = vshrl.u32 %v957, 7
        %v959 = vsub.s32 2, %v958
        %v960 = vrot.slane %v947, %v959
        %v961 = vlaneseq
        %v962 = vshrl.u32 %v961, 7
        %v963 = vsub.s32 3, %v962
        %v964 = vrot.slane %v947, %v963
        %v965 = vlaneseq
        %v966 = vshrl.u32 %v965, 7
        %v967 = vsub.s32 4, %v966
        %v968 = vrot.slane %v947, %v967
        %v969 = vlaneseq
        %v970 = vshrl.u32 %v969, 7
        %v971 = vsub.s32 5, %v970
        %v972 = vrot.slane %v947, %v971
        %v973 = vlaneseq
        %v974 = vshrl.u32 %v973, 7
        %v975 = vsub.s32 6, %v974
        %v976 = vrot.slane %v947, %v975
        %v977 = vlaneseq
        %v978 = vshrl.u32 %v977, 7
        %v979 = vsub.s32 7, %v978
        %v980 = vrot.slane %v947, %v979
        %v989 = vpack.c.bf16 %v952, %v952
        %v990 = vpack.c.bf16 %v956, %v956
        %v991 = vpack.c.bf16 %v960, %v960
        %v992 = vpack.c.bf16 %v964, %v964
        %v993 = vpack.c.bf16 %v968, %v968
        %v994 = vpack.c.bf16 %v972, %v972
        %v995 = vpack.c.bf16 %v976, %v976
        %v996 = vpack.c.bf16 %v980, %v980
        %v997 = vld [vmem:[#allocation5] sm:$0xf]
        %v998 = vld [vmem:[#allocation5 + $0x4] sm:$0xf]
        %v999 = vld [vmem:[#allocation5 + $0x8] sm:$0xf]
        %v1000 = vld [vmem:[#allocation5 + $0xc] sm:$0xf]
        %v1001 = vld [vmem:[#allocation5 + $0x10] sm:$0xf]
        %v1002 = vld [vmem:[#allocation5 + $0x14] sm:$0xf]
        %v1003 = vld [vmem:[#allocation5 + $0x18] sm:$0xf]
        %v1004 = vld [vmem:[#allocation5 + $0x1c] sm:$0xf]
        %v1005 = vld [vmem:[#allocation5 + $0x20] sm:$0xf]
        %v1006 = vld [vmem:[#allocation5 + $0x24] sm:$0xf]
        %v1007 = vld [vmem:[#allocation5 + $0x28] sm:$0xf]
        %v1008 = vld [vmem:[#allocation5 + $0x2c] sm:$0xf]
        %v1009 = vld [vmem:[#allocation5 + $0x30] sm:$0xf]
        %v1010 = vld [vmem:[#allocation5 + $0x34] sm:$0xf]
        %v1011 = vld [vmem:[#allocation5 + $0x38] sm:$0xf]
        %v1012 = vld [vmem:[#allocation5 + $0x3c] sm:$0xf]
        %v1013 = vld [vmem:[#allocation5 + $0x40] sm:$0xf]
        %v1014 = vld [vmem:[#allocation5 + $0x44] sm:$0xf]
        %v1015 = vld [vmem:[#allocation5 + $0x48] sm:$0xf]
        %v1016 = vld [vmem:[#allocation5 + $0x4c] sm:$0xf]
        %v1017 = vld [vmem:[#allocation5 + $0x50] sm:$0xf]
        %v1018 = vld [vmem:[#allocation5 + $0x54] sm:$0xf]
        %v1019 = vld [vmem:[#allocation5 + $0x58] sm:$0xf]
        %v1020 = vld [vmem:[#allocation5 + $0x5c] sm:$0xf]
        %v1021 = vld [vmem:[#allocation5 + $0x60] sm:$0xf]
        %v1022 = vld [vmem:[#allocation5 + $0x64] sm:$0xf]
        %v1023 = vld [vmem:[#allocation5 + $0x68] sm:$0xf]
        %v1024 = vld [vmem:[#allocation5 + $0x6c] sm:$0xf]
        %v1025 = vld [vmem:[#allocation5 + $0x70] sm:$0xf]
        %v1026 = vld [vmem:[#allocation5 + $0x74] sm:$0xf]
        %v1027 = vld [vmem:[#allocation5 + $0x78] sm:$0xf]
        %v1028 = vld [vmem:[#allocation5 + $0x7c] sm:$0xf]
        %v1029 = vld [vmem:[#allocation5 + $0x80] sm:$0xf]
        %v1030 = vld [vmem:[#allocation5 + $0x84] sm:$0xf]
        %v1031 = vld [vmem:[#allocation5 + $0x88] sm:$0xf]
        %v1032 = vld [vmem:[#allocation5 + $0x8c] sm:$0xf]
        %v1033 = vld [vmem:[#allocation5 + $0x90] sm:$0xf]
        %v1034 = vld [vmem:[#allocation5 + $0x94] sm:$0xf]
        %v1035 = vld [vmem:[#allocation5 + $0x98] sm:$0xf]
        %v1036 = vld [vmem:[#allocation5 + $0x9c] sm:$0xf]
        %v1037 = vld [vmem:[#allocation5 + $0xa0] sm:$0xf]
        %v1038 = vld [vmem:[#allocation5 + $0xa4] sm:$0xf]
        %v1039 = vld [vmem:[#allocation5 + $0xa8] sm:$0xf]
        %v1040 = vld [vmem:[#allocation5 + $0xac] sm:$0xf]
        %v1041 = vld [vmem:[#allocation5 + $0xb0] sm:$0xf]
        %v1042 = vld [vmem:[#allocation5 + $0xb4] sm:$0xf]
        %v1043 = vld [vmem:[#allocation5 + $0xb8] sm:$0xf]
        %v1044 = vld [vmem:[#allocation5 + $0xbc] sm:$0xf]
        %v1045 = vld [vmem:[#allocation5 + $0xc0] sm:$0xf]
        %v1046 = vld [vmem:[#allocation5 + $0xc4] sm:$0xf]
        %v1047 = vld [vmem:[#allocation5 + $0xc8] sm:$0xf]
        %v1048 = vld [vmem:[#allocation5 + $0xcc] sm:$0xf]
        %v1049 = vld [vmem:[#allocation5 + $0xd0] sm:$0xf]
        %v1050 = vld [vmem:[#allocation5 + $0xd4] sm:$0xf]
        %v1051 = vld [vmem:[#allocation5 + $0xd8] sm:$0xf]
        %v1052 = vld [vmem:[#allocation5 + $0xdc] sm:$0xf]
        %v1053 = vld [vmem:[#allocation5 + $0xe0] sm:$0xf]
        %v1054 = vld [vmem:[#allocation5 + $0xe4] sm:$0xf]
        %v1055 = vld [vmem:[#allocation5 + $0xe8] sm:$0xf]
        %v1056 = vld [vmem:[#allocation5 + $0xec] sm:$0xf]
        %v1057 = vld [vmem:[#allocation5 + $0xf0] sm:$0xf]
        %v1058 = vld [vmem:[#allocation5 + $0xf4] sm:$0xf]
        %v1059 = vld [vmem:[#allocation5 + $0xf8] sm:$0xf]
        %v1060 = vld [vmem:[#allocation5 + $0xfc] sm:$0xf]
        %v1061 = vld [vmem:[#allocation5 + $0x100] sm:$0xf]
        %v1062 = vld [vmem:[#allocation5 + $0x104] sm:$0xf]
        %v1063 = vld [vmem:[#allocation5 + $0x108] sm:$0xf]
        %v1064 = vld [vmem:[#allocation5 + $0x10c] sm:$0xf]
        %v1065 = vld [vmem:[#allocation5 + $0x110] sm:$0xf]
        %v1066 = vld [vmem:[#allocation5 + $0x114] sm:$0xf]
        %v1067 = vld [vmem:[#allocation5 + $0x118] sm:$0xf]
        %v1068 = vld [vmem:[#allocation5 + $0x11c] sm:$0xf]
        %v1069 = vld [vmem:[#allocation5 + $0x120] sm:$0xf]
        %v1070 = vld [vmem:[#allocation5 + $0x124] sm:$0xf]
        %v1071 = vld [vmem:[#allocation5 + $0x128] sm:$0xf]
        %v1072 = vld [vmem:[#allocation5 + $0x12c] sm:$0xf]
        %v1073 = vld [vmem:[#allocation5 + $0x130] sm:$0xf]
        %v1074 = vld [vmem:[#allocation5 + $0x134] sm:$0xf]
        %v1075 = vld [vmem:[#allocation5 + $0x138] sm:$0xf]
        %v1076 = vld [vmem:[#allocation5 + $0x13c] sm:$0xf]
        %v1077 = vld [vmem:[#allocation5 + $0x140] sm:$0xf]
        %v1078 = vld [vmem:[#allocation5 + $0x144] sm:$0xf]
        %v1079 = vld [vmem:[#allocation5 + $0x148] sm:$0xf]
        %v1080 = vld [vmem:[#allocation5 + $0x14c] sm:$0xf]
        %v1081 = vld [vmem:[#allocation5 + $0x150] sm:$0xf]
        %v1082 = vld [vmem:[#allocation5 + $0x154] sm:$0xf]
        %v1083 = vld [vmem:[#allocation5 + $0x158] sm:$0xf]
        %v1084 = vld [vmem:[#allocation5 + $0x15c] sm:$0xf]
        %v1085 = vld [vmem:[#allocation5 + $0x160] sm:$0xf]
        %v1086 = vld [vmem:[#allocation5 + $0x164] sm:$0xf]
        %v1087 = vld [vmem:[#allocation5 + $0x168] sm:$0xf]
        %v1088 = vld [vmem:[#allocation5 + $0x16c] sm:$0xf]
        %v1089 = vld [vmem:[#allocation5 + $0x170] sm:$0xf]
        %v1090 = vld [vmem:[#allocation5 + $0x174] sm:$0xf]
        %v1091 = vld [vmem:[#allocation5 + $0x178] sm:$0xf]
        %v1092 = vld [vmem:[#allocation5 + $0x17c] sm:$0xf]
        %v1093 = vld [vmem:[#allocation5 + $0x180] sm:$0xf]
        %v1094 = vld [vmem:[#allocation5 + $0x184] sm:$0xf]
        %v1095 = vld [vmem:[#allocation5 + $0x188] sm:$0xf]
        %v1096 = vld [vmem:[#allocation5 + $0x18c] sm:$0xf]
        %v1097 = vld [vmem:[#allocation5 + $0x190] sm:$0xf]
        %v1098 = vld [vmem:[#allocation5 + $0x194] sm:$0xf]
        %v1099 = vld [vmem:[#allocation5 + $0x198] sm:$0xf]
        %v1100 = vld [vmem:[#allocation5 + $0x19c] sm:$0xf]
        %v1101 = vld [vmem:[#allocation5 + $0x1a0] sm:$0xf]
        %v1102 = vld [vmem:[#allocation5 + $0x1a4] sm:$0xf]
        %v1103 = vld [vmem:[#allocation5 + $0x1a8] sm:$0xf]
        %v1104 = vld [vmem:[#allocation5 + $0x1ac] sm:$0xf]
        %v1105 = vld [vmem:[#allocation5 + $0x1b0] sm:$0xf]
        %v1106 = vld [vmem:[#allocation5 + $0x1b4] sm:$0xf]
        %v1107 = vld [vmem:[#allocation5 + $0x1b8] sm:$0xf]
        %v1108 = vld [vmem:[#allocation5 + $0x1bc] sm:$0xf]
        %v1109 = vld [vmem:[#allocation5 + $0x1c0] sm:$0xf]
        %v1110 = vld [vmem:[#allocation5 + $0x1c4] sm:$0xf]
        %v1111 = vld [vmem:[#allocation5 + $0x1c8] sm:$0xf]
        %v1112 = vld [vmem:[#allocation5 + $0x1cc] sm:$0xf]
        %v1113 = vld [vmem:[#allocation5 + $0x1d0] sm:$0xf]
        %v1114 = vld [vmem:[#allocation5 + $0x1d4] sm:$0xf]
        %v1115 = vld [vmem:[#allocation5 + $0x1d8] sm:$0xf]
        %v1116 = vld [vmem:[#allocation5 + $0x1dc] sm:$0xf]
        %v1117 = vld [vmem:[#allocation5 + $0x1e0] sm:$0xf]
        %v1118 = vld [vmem:[#allocation5 + $0x1e4] sm:$0xf]
        %v1119 = vld [vmem:[#allocation5 + $0x1e8] sm:$0xf]
        %v1120 = vld [vmem:[#allocation5 + $0x1ec] sm:$0xf]
        %v1121 = vld [vmem:[#allocation5 + $0x1f0] sm:$0xf]
        %v1122 = vld [vmem:[#allocation5 + $0x1f4] sm:$0xf]
        %v1123 = vld [vmem:[#allocation5 + $0x1f8] sm:$0xf]
        %v1124 = vld [vmem:[#allocation5 + $0x1fc] sm:$0xf]
        %v1125 = vld [vmem:[%s8] sm:$0x1]
        %v1254 = vunpack.c.l.b16 %v997
        %v1255 = vunpack.c.l.b16 %v998
        %v1256 = vunpack.c.l.b16 %v999
        %v1257 = vunpack.c.l.b16 %v1000
        %v1258 = vunpack.c.l.b16 %v1001
        %v1259 = vunpack.c.l.b16 %v1002
        %v1260 = vunpack.c.l.b16 %v1003
        %v1261 = vunpack.c.l.b16 %v1004
        %v1262 = vunpack.c.l.b16 %v1005
        %v1263 = vunpack.c.l.b16 %v1006
        %v1264 = vunpack.c.l.b16 %v1007
        %v1265 = vunpack.c.l.b16 %v1008
        %v1266 = vunpack.c.l.b16 %v1009
        %v1267 = vunpack.c.l.b16 %v1010
        %v1268 = vunpack.c.l.b16 %v1011
        %v1269 = vunpack.c.l.b16 %v1012
        %v1270 = vunpack.c.l.b16 %v1013
        %v1271 = vunpack.c.l.b16 %v1014
        %v1272 = vunpack.c.l.b16 %v1015
        %v1273 = vunpack.c.l.b16 %v1016
        %v1274 = vunpack.c.l.b16 %v1017
        %v1275 = vunpack.c.l.b16 %v1018
        %v1276 = vunpack.c.l.b16 %v1019
        %v1277 = vunpack.c.l.b16 %v1020
        %v1278 = vunpack.c.l.b16 %v1021
        %v1279 = vunpack.c.l.b16 %v1022
        %v1280 = vunpack.c.l.b16 %v1023
        %v1281 = vunpack.c.l.b16 %v1024
        %v1282 = vunpack.c.l.b16 %v1025
        %v1283 = vunpack.c.l.b16 %v1026
        %v1284 = vunpack.c.l.b16 %v1027
        %v1285 = vunpack.c.l.b16 %v1028
        %v1286 = vunpack.c.l.b16 %v1029
        %v1287 = vunpack.c.l.b16 %v1030
        %v1288 = vunpack.c.l.b16 %v1031
        %v1289 = vunpack.c.l.b16 %v1032
        %v1290 = vunpack.c.l.b16 %v1033
        %v1291 = vunpack.c.l.b16 %v1034
        %v1292 = vunpack.c.l.b16 %v1035
        %v1293 = vunpack.c.l.b16 %v1036
        %v1294 = vunpack.c.l.b16 %v1037
        %v1295 = vunpack.c.l.b16 %v1038
        %v1296 = vunpack.c.l.b16 %v1039
        %v1297 = vunpack.c.l.b16 %v1040
        %v1298 = vunpack.c.l.b16 %v1041
        %v1299 = vunpack.c.l.b16 %v1042
        %v1300 = vunpack.c.l.b16 %v1043
        %v1301 = vunpack.c.l.b16 %v1044
        %v1302 = vunpack.c.l.b16 %v1045
        %v1303 = vunpack.c.l.b16 %v1046
        %v1304 = vunpack.c.l.b16 %v1047
        %v1305 = vunpack.c.l.b16 %v1048
        %v1306 = vunpack.c.l.b16 %v1049
        %v1307 = vunpack.c.l.b16 %v1050
        %v1308 = vunpack.c.l.b16 %v1051
        %v1309 = vunpack.c.l.b16 %v1052
        %v1310 = vunpack.c.l.b16 %v1053
        %v1311 = vunpack.c.l.b16 %v1054
        %v1312 = vunpack.c.l.b16 %v1055
        %v1313 = vunpack.c.l.b16 %v1056
        %v1314 = vunpack.c.l.b16 %v1057
        %v1315 = vunpack.c.l.b16 %v1058
        %v1316 = vunpack.c.l.b16 %v1059
        %v1317 = vunpack.c.l.b16 %v1060
        %v1318 = vunpack.c.l.b16 %v1061
        %v1319 = vunpack.c.l.b16 %v1062
        %v1320 = vunpack.c.l.b16 %v1063
        %v1321 = vunpack.c.l.b16 %v1064
        %v1322 = vunpack.c.l.b16 %v1065
        %v1323 = vunpack.c.l.b16 %v1066
        %v1324 = vunpack.c.l.b16 %v1067
        %v1325 = vunpack.c.l.b16 %v1068
        %v1326 = vunpack.c.l.b16 %v1069
        %v1327 = vunpack.c.l.b16 %v1070
        %v1328 = vunpack.c.l.b16 %v1071
        %v1329 = vunpack.c.l.b16 %v1072
        %v1330 = vunpack.c.l.b16 %v1073
        %v1331 = vunpack.c.l.b16 %v1074
        %v1332 = vunpack.c.l.b16 %v1075
        %v1333 = vunpack.c.l.b16 %v1076
        %v1334 = vunpack.c.l.b16 %v1077
        %v1335 = vunpack.c.l.b16 %v1078
        %v1336 = vunpack.c.l.b16 %v1079
        %v1337 = vunpack.c.l.b16 %v1080
        %v1338 = vunpack.c.l.b16 %v1081
        %v1339 = vunpack.c.l.b16 %v1082
        %v1340 = vunpack.c.l.b16 %v1083
        %v1341 = vunpack.c.l.b16 %v1084
        %v1342 = vunpack.c.l.b16 %v1085
        %v1343 = vunpack.c.l.b16 %v1086
        %v1344 = vunpack.c.l.b16 %v1087
        %v1345 = vunpack.c.l.b16 %v1088
        %v1346 = vunpack.c.l.b16 %v1089
        %v1347 = vunpack.c.l.b16 %v1090
        %v1348 = vunpack.c.l.b16 %v1091
        %v1349 = vunpack.c.l.b16 %v1092
        %v1350 = vunpack.c.l.b16 %v1093
        %v1351 = vunpack.c.l.b16 %v1094
        %v1352 = vunpack.c.l.b16 %v1095
        %v1353 = vunpack.c.l.b16 %v1096
        %v1354 = vunpack.c.l.b16 %v1097
        %v1355 = vunpack.c.l.b16 %v1098
        %v1356 = vunpack.c.l.b16 %v1099
        %v1357 = vunpack.c.l.b16 %v1100
        %v1358 = vunpack.c.l.b16 %v1101
        %v1359 = vunpack.c.l.b16 %v1102
        %v1360 = vunpack.c.l.b16 %v1103
        %v1361 = vunpack.c.l.b16 %v1104
        %v1362 = vunpack.c.l.b16 %v1105
        %v1363 = vunpack.c.l.b16 %v1106
        %v1364 = vunpack.c.l.b16 %v1107
        %v1365 = vunpack.c.l.b16 %v1108
        %v1366 = vunpack.c.l.b16 %v1109
        %v1367 = vunpack.c.l.b16 %v1110
        %v1368 = vunpack.c.l.b16 %v1111
        %v1369 = vunpack.c.l.b16 %v1112
        %v1370 = vunpack.c.l.b16 %v1113
        %v1371 = vunpack.c.l.b16 %v1114
        %v1372 = vunpack.c.l.b16 %v1115
        %v1373 = vunpack.c.l.b16 %v1116
        %v1374 = vunpack.c.l.b16 %v1117
        %v1375 = vunpack.c.l.b16 %v1118
        %v1376 = vunpack.c.l.b16 %v1119
        %v1377 = vunpack.c.l.b16 %v1120
        %v1378 = vunpack.c.l.b16 %v1121
        %v1379 = vunpack.c.l.b16 %v1122
        %v1380 = vunpack.c.l.b16 %v1123
        %v1381 = vunpack.c.l.b16 %v1124
        %v1382 = vpack.c.b16 %v1255, %v1254
        %v1383 = vpack.c.b16 %v1257, %v1256
        %v1384 = vpack.c.b16 %v1259, %v1258
        %v1385 = vpack.c.b16 %v1261, %v1260
        %v1386 = vpack.c.b16 %v1263, %v1262
        %v1387 = vpack.c.b16 %v1265, %v1264
        %v1388 = vpack.c.b16 %v1267, %v1266
        %v1389 = vpack.c.b16 %v1269, %v1268
        %v1390 = vpack.c.b16 %v1271, %v1270
        %v1391 = vpack.c.b16 %v1273, %v1272
        %v1392 = vpack.c.b16 %v1275, %v1274
        %v1393 = vpack.c.b16 %v1277, %v1276
        %v1394 = vpack.c.b16 %v1279, %v1278
        %v1395 = vpack.c.b16 %v1281, %v1280
        %v1396 = vpack.c.b16 %v1283, %v1282
        %v1397 = vpack.c.b16 %v1285, %v1284
        %v1398 = vpack.c.b16 %v1287, %v1286
        %v1399 = vpack.c.b16 %v1289, %v1288
        %v1400 = vpack.c.b16 %v1291, %v1290
        %v1401 = vpack.c.b16 %v1293, %v1292
        %v1402 = vpack.c.b16 %v1295, %v1294
        %v1403 = vpack.c.b16 %v1297, %v1296
        %v1404 = vpack.c.b16 %v1299, %v1298
        %v1405 = vpack.c.b16 %v1301, %v1300
        %v1406 = vpack.c.b16 %v1303, %v1302
        %v1407 = vpack.c.b16 %v1305, %v1304
        %v1408 = vpack.c.b16 %v1307, %v1306
        %v1409 = vpack.c.b16 %v1309, %v1308
        %v1410 = vpack.c.b16 %v1311, %v1310
        %v1411 = vpack.c.b16 %v1313, %v1312
        %v1412 = vpack.c.b16 %v1315, %v1314
        %v1413 = vpack.c.b16 %v1317, %v1316
        %v1414 = vpack.c.b16 %v1319, %v1318
        %v1415 = vpack.c.b16 %v1321, %v1320
        %v1416 = vpack.c.b16 %v1323, %v1322
        %v1417 = vpack.c.b16 %v1325, %v1324
        %v1418 = vpack.c.b16 %v1327, %v1326
        %v1419 = vpack.c.b16 %v1329, %v1328
        %v1420 = vpack.c.b16 %v1331, %v1330
        %v1421 = vpack.c.b16 %v1333, %v1332
        %v1422 = vpack.c.b16 %v1335, %v1334
        %v1423 = vpack.c.b16 %v1337, %v1336
        %v1424 = vpack.c.b16 %v1339, %v1338
        %v1425 = vpack.c.b16 %v1341, %v1340
        %v1426 = vpack.c.b16 %v1343, %v1342
        %v1427 = vpack.c.b16 %v1345, %v1344
        %v1428 = vpack.c.b16 %v1347, %v1346
        %v1429 = vpack.c.b16 %v1349, %v1348
        %v1430 = vpack.c.b16 %v1351, %v1350
        %v1431 = vpack.c.b16 %v1353, %v1352
        %v1432 = vpack.c.b16 %v1355, %v1354
        %v1433 = vpack.c.b16 %v1357, %v1356
        %v1434 = vpack.c.b16 %v1359, %v1358
        %v1435 = vpack.c.b16 %v1361, %v1360
        %v1436 = vpack.c.b16 %v1363, %v1362
        %v1437 = vpack.c.b16 %v1365, %v1364
        %v1438 = vpack.c.b16 %v1367, %v1366
        %v1439 = vpack.c.b16 %v1369, %v1368
        %v1440 = vpack.c.b16 %v1371, %v1370
        %v1441 = vpack.c.b16 %v1373, %v1372
        %v1442 = vpack.c.b16 %v1375, %v1374
        %v1443 = vpack.c.b16 %v1377, %v1376
        %v1444 = vpack.c.b16 %v1379, %v1378
        %v1445 = vpack.c.b16 %v1381, %v1380
        %1510 = vmatprep.subr.bf16.mxu0 0
        %1511 = vmatpush1.bf16.msra.mxu0 %v1382
        %1512 = vmatprep.subr.bf16.mxu0 0
        %1513 = vmatpush1.bf16.msra.mxu0 %v1383
        %1514 = vmatprep.subr.bf16.mxu0 0
        %1515 = vmatpush1.bf16.msra.mxu0 %v1384
        %1516 = vmatprep.subr.bf16.mxu0 0
        %1517 = vmatpush1.bf16.msra.mxu0 %v1385
        %1518 = vmatprep.subr.bf16.mxu0 0
        %1519 = vmatpush1.bf16.msra.mxu0 %v1386
        %1520 = vmatprep.subr.bf16.mxu0 0
        %1521 = vmatpush1.bf16.msra.mxu0 %v1387
        %1522 = vmatprep.subr.bf16.mxu0 0
        %1523 = vmatpush1.bf16.msra.mxu0 %v1388
        %1524 = vmatprep.subr.bf16.mxu0 0
        %1525 = vmatpush1.bf16.msra.mxu0 %v1389
        %1526 = vmatprep.subr.bf16.mxu0 0
        %1527 = vmatpush1.bf16.msra.mxu0 %v1390
        %1528 = vmatprep.subr.bf16.mxu0 0
        %1529 = vmatpush1.bf16.msra.mxu0 %v1391
        %1530 = vmatprep.subr.bf16.mxu0 0
        %1531 = vmatpush1.bf16.msra.mxu0 %v1392
        %1532 = vmatprep.subr.bf16.mxu0 0
        %1533 = vmatpush1.bf16.msra.mxu0 %v1393
        %1534 = vmatprep.subr.bf16.mxu0 0
        %1535 = vmatpush1.bf16.msra.mxu0 %v1394
        %1536 = vmatprep.subr.bf16.mxu0 0
        %1537 = vmatpush1.bf16.msra.mxu0 %v1395
        %1538 = vmatprep.subr.bf16.mxu0 0
        %1539 = vmatpush1.bf16.msra.mxu0 %v1396
        %1540 = vmatprep.subr.bf16.mxu0 0
        %1541 = vmatpush1.bf16.msra.mxu0 %v1397
        %1542 = vmatprep.mubr.bf16.mxu0 %v990
        %1543 = vmatmul.mubr.bf16.gmra.mrb[0].mxu0 %v989
        %v1544 = vpop.f32.mrb[0].mxu0
        %v1545 = vadd.f32 %v1125, %v1544
        %v1546 = vpop.f32.mrb[0].mxu0
        %v1547 = vpop.f32.mrb[0].mxu0
        %v1548 = vpop.f32.mrb[0].mxu0
        %1549 = vdwg.mxu0
        %1550 = vmatprep.subr.bf16.mxu0 0
        %1551 = vmatpush1.bf16.msra.mxu0 %v1398
        %1552 = vmatprep.subr.bf16.mxu0 0
        %1553 = vmatpush1.bf16.msra.mxu0 %v1399
        %1554 = vmatprep.subr.bf16.mxu0 0
        %1555 = vmatpush1.bf16.msra.mxu0 %v1400
        %1556 = vmatprep.subr.bf16.mxu0 0
        %1557 = vmatpush1.bf16.msra.mxu0 %v1401
        %1558 = vmatprep.subr.bf16.mxu0 0
        %1559 = vmatpush1.bf16.msra.mxu0 %v1402
        %1560 = vmatprep.subr.bf16.mxu0 0
        %1561 = vmatpush1.bf16.msra.mxu0 %v1403
        %1562 = vmatprep.subr.bf16.mxu0 0
        %1563 = vmatpush1.bf16.msra.mxu0 %v1404
        %1564 = vmatprep.subr.bf16.mxu0 0
        %1565 = vmatpush1.bf16.msra.mxu0 %v1405
        %1566 = vmatprep.subr.bf16.mxu0 0
        %1567 = vmatpush1.bf16.msra.mxu0 %v1406
        %1568 = vmatprep.subr.bf16.mxu0 0
        %1569 = vmatpush1.bf16.msra.mxu0 %v1407
        %1570 = vmatprep.subr.bf16.mxu0 0
        %1571 = vmatpush1.bf16.msra.mxu0 %v1408
        %1572 = vmatprep.subr.bf16.mxu0 0
        %1573 = vmatpush1.bf16.msra.mxu0 %v1409
        %1574 = vmatprep.subr.bf16.mxu0 0
        %1575 = vmatpush1.bf16.msra.mxu0 %v1410
        %1576 = vmatprep.subr.bf16.mxu0 0
        %1577 = vmatpush1.bf16.msra.mxu0 %v1411
        %1578 = vmatprep.subr.bf16.mxu0 0
        %1579 = vmatpush1.bf16.msra.mxu0 %v1412
        %1580 = vmatprep.subr.bf16.mxu0 0
        %1581 = vmatpush1.bf16.msra.mxu0 %v1413
        %1582 = vmatprep.mubr.bf16.mxu0 %v992
        %1583 = vmatmul.mubr.bf16.gmra.mrb[0].mxu0 %v991
        %v1584 = vpop.f32.mrb[0].mxu0
        %v1585 = vadd.f32 %v1545, %v1584
        %v1586 = vpop.f32.mrb[0].mxu0
        %v1587 = vpop.f32.mrb[0].mxu0
        %v1588 = vpop.f32.mrb[0].mxu0
        %1589 = vdwg.mxu0
        %1590 = vmatprep.subr.bf16.mxu0 0
        %1591 = vmatpush1.bf16.msra.mxu0 %v1414
        %1592 = vmatprep.subr.bf16.mxu0 0
        %1593 = vmatpush1.bf16.msra.mxu0 %v1415
        %1594 = vmatprep.subr.bf16.mxu0 0
        %1595 = vmatpush1.bf16.msra.mxu0 %v1416
        %1596 = vmatprep.subr.bf16.mxu0 0
        %1597 = vmatpush1.bf16.msra.mxu0 %v1417
        %1598 = vmatprep.subr.bf16.mxu0 0
        %1599 = vmatpush1.bf16.msra.mxu0 %v1418
        %1600 = vmatprep.subr.bf16.mxu0 0
        %1601 = vmatpush1.bf16.msra.mxu0 %v1419
        %1602 = vmatprep.subr.bf16.mxu0 0
        %1603 = vmatpush1.bf16.msra.mxu0 %v1420
        %1604 = vmatprep.subr.bf16.mxu0 0
        %1605 = vmatpush1.bf16.msra.mxu0 %v1421
        %1606 = vmatprep.subr.bf16.mxu0 0
        %1607 = vmatpush1.bf16.msra.mxu0 %v1422
        %1608 = vmatprep.subr.bf16.mxu0 0
        %1609 = vmatpush1.bf16.msra.mxu0 %v1423
        %1610 = vmatprep.subr.bf16.mxu0 0
        %1611 = vmatpush1.bf16.msra.mxu0 %v1424
        %1612 = vmatprep.subr.bf16.mxu0 0
        %1613 = vmatpush1.bf16.msra.mxu0 %v1425
        %1614 = vmatprep.subr.bf16.mxu0 0
        %1615 = vmatpush1.bf16.msra.mxu0 %v1426
        %1616 = vmatprep.subr.bf16.mxu0 0
        %1617 = vmatpush1.bf16.msra.mxu0 %v1427
        %1618 = vmatprep.subr.bf16.mxu0 0
        %1619 = vmatpush1.bf16.msra.mxu0 %v1428
        %1620 = vmatprep.subr.bf16.mxu0 0
        %1621 = vmatpush1.bf16.msra.mxu0 %v1429
        %1622 = vmatprep.mubr.bf16.mxu0 %v994
        %1623 = vmatmul.mubr.bf16.gmra.mrb[0].mxu0 %v993
        %v1624 = vpop.f32.mrb[0].mxu0
        %v1625 = vadd.f32 %v1585, %v1624
        %v1626 = vpop.f32.mrb[0].mxu0
        %v1627 = vpop.f32.mrb[0].mxu0
        %v1628 = vpop.f32.mrb[0].mxu0
        %1629 = vdwg.mxu0
        %1630 = vmatprep.subr.bf16.mxu0 0
        %1631 = vmatpush1.bf16.msra.mxu0 %v1430
        %1632 = vmatprep.subr.bf16.mxu0 0
        %1633 = vmatpush1.bf16.msra.mxu0 %v1431
        %1634 = vmatprep.subr.bf16.mxu0 0
        %1635 = vmatpush1.bf16.msra.mxu0 %v1432
        %1636 = vmatprep.subr.bf16.mxu0 0
        %1637 = vmatpush1.bf16.msra.mxu0 %v1433
        %1638 = vmatprep.subr.bf16.mxu0 0
        %1639 = vmatpush1.bf16.msra.mxu0 %v1434
        %1640 = vmatprep.subr.bf16.mxu0 0
        %1641 = vmatpush1.bf16.msra.mxu0 %v1435
        %1642 = vmatprep.subr.bf16.mxu0 0
        %1643 = vmatpush1.bf16.msra.mxu0 %v1436
        %1644 = vmatprep.subr.bf16.mxu0 0
        %1645 = vmatpush1.bf16.msra.mxu0 %v1437
        %1646 = vmatprep.subr.bf16.mxu0 0
        %1647 = vmatpush1.bf16.msra.mxu0 %v1438
        %1648 = vmatprep.subr.bf16.mxu0 0
        %1649 = vmatpush1.bf16.msra.mxu0 %v1439
        %1650 = vmatprep.subr.bf16.mxu0 0
        %1651 = vmatpush1.bf16.msra.mxu0 %v1440
        %1652 = vmatprep.subr.bf16.mxu0 0
        %1653 = vmatpush1.bf16.msra.mxu0 %v1441
        %1654 = vmatprep.subr.bf16.mxu0 0
        %1655 = vmatpush1.bf16.msra.mxu0 %v1442
        %1656 = vmatprep.subr.bf16.mxu0 0
        %1657 = vmatpush1.bf16.msra.mxu0 %v1443
        %1658 = vmatprep.subr.bf16.mxu0 0
        %1659 = vmatpush1.bf16.msra.mxu0 %v1444
        %1660 = vmatprep.subr.bf16.mxu0 0
        %1661 = vmatpush1.bf16.msra.mxu0 %v1445
        %1662 = vmatprep.mubr.bf16.mxu0 %v996
        %1663 = vmatmul.mubr.bf16.gmra.mrb[0].mxu0 %v995
        %v1664 = vpop.f32.mrb[0].mxu0
        %v1665 = vadd.f32 %v1625, %v1664
        %v1666 = vpop.f32.mrb[0].mxu0
        %v1667 = vpop.f32.mrb[0].mxu0
        %v1668 = vpop.f32.mrb[0].mxu0
        %1669 = vdwg.mxu0
        %vm1670 = vcmask 73728
        %1671 = vst.msk [vmem:[%s339] sm:$0x1] %vm1670, %v1665
        %s1672 = sand.u32 %s226, 1
        %s1673 = scalar_lea.sflag [#allocation7], %s1672
        %s1674 = sand.u32 %s226, 1
        %s1675 = scalar_lea.vmem [#allocation8], %s1674
        // Predicated region
        $region61: #{forward.1} parent=55 // pred_check
          %p1676 = pneg %p236
        $region62: #{forward.1} parent=55 // pred_check_branch
          %1678 = sbr.rel (%p1676) target = $region64
        $region63: #{forward.1} parent=55 // pred_region
          %s1680 = ssub.s32 16, 16
          %1681 = vsyncadd %s1673, %s1680
          %s1682 = smul.addr %s24, 16
          %s1683 = scalar_lea.hbm %s9, %s1682
          %s1685 = sshll.u32 %s1675, 4
          %s1686 = int_to_ptr.vmem [resolvable:$true] %s1685
          %1688 = dma.vmem_to_hbm [thread:$0]  %s1686, 16, %s1683, %s1673
        $region64: #{forward.1} parent=55 // pred_fallthru
          _
      $region56: #{forward.1} parent=5 // pred_fallthru
        _
      %p1689 = scmp.le.s32.totalorder 2, %s19
      // Predicated region
      $region65: #{forward.1} parent=5 // pred_check
        %p1690 = pneg %p1689
      $region66: #{forward.1} parent=5 // pred_check_branch
        %1692 = sbr.rel (%p1690) target = $region68
      $region67: #{forward.1} parent=5 // pred_region
        %s1693 = ssub.s32 %s19, 2
        // Predicated region
        $region69: #{forward.1} parent=67 // pred_check
          %p1694 = pneg %p242
        $region70: #{forward.1} parent=67 // pred_check_branch
          %1696 = sbr.rel (%p1694) target = $region72
        $region71: #{forward.1} parent=67 // pred_region
          %s1697 = sand.u32 %s227, 1
          %s1698 = scalar_lea.sflag [#allocation7], %s1697
          %s1699 = sand.u32 %s227, 1
          %s1700 = scalar_lea.vmem [#allocation8], %s1699
          %1701 = dma.done %s1698, 16
        $region72: #{forward.1} parent=67 // pred_fallthru
          _
      $region68: #{forward.1} parent=5 // pred_fallthru
        _
    $region6: #{forward.1} parent=1 // loop_footer
      %s23 = sadd.s32 1, %s19
    $region7: #{forward.1} parent=1 // loop_footer_branch
      %18 = sbr.rel target = $region3
    $region8: #{forward.1} parent=1 // loop_exit
      _
    %1702 = vsyncpa [#allocation6], 1
    %s1703 = scalar_lea.sflag [#allocation6], 1
    %1704 = vsyncpa %s1703, 1
    %1705 = vsyncpa [#allocation7], 1
    %s1706 = scalar_lea.sflag [#allocation7], 1
    %1707 = vsyncpa %s1706, 1

</llo_original>
